<compile_context>
chip_gen: v7x
topology: tpu7x:2x2x1
jax: 0.10.0
libtpu: 0.0.40
codegen_flags: <defaults>
</compile_context>

<pallas_src>
import jax
import jax.numpy as jnp
from jax.experimental import pallas as pl
from jax.experimental.pallas import tpu as pltpu
import numpy as np

EMBEDDING_SIZE = 10
HIDDEN_SIZE = 8
INPUT_SIZE = 4      # vocab size for the embedding
NUM_CLASS = 4
NUM_LAYERS = 2


# ---------------------------------------------------------------------------
# Pallas kernel: 2-layer tanh RNN recurrence with the FC hoisted out.
# ---------------------------------------------------------------------------
def rnn_fc_kernel(x_ref,        # (T, B, H)  pre-projected inputs (embed@Wih0 + b0)
                  whh0_ref,     # (H, H)     layer-0 recurrent weight (transposed)
                  w1_ref,       # (2H, H)    layer-1 [Wih1; Whh1] (transposed, stacked)
                  b1_ref,       # (1, H)     bias_ih_l1 + bias_hh_l1
                  wfc_ref,      # (H, C)     fc weight (transposed)
                  bfc_ref,      # (1, C)     fc bias
                  out_ref):     # (T*B, C)   time-major flattened logits
    T, B, H = x_ref.shape

    # Hoist all loads / broadcasts out of the recurrence.
    x_all = x_ref[...]                                    # (T, B, H), one load
    whh0 = whh0_ref[...]
    w1 = w1_ref[...]
    b1 = jnp.broadcast_to(b1_ref[...], (B, H))            # hoisted broadcast
    wfc = wfc_ref[...]
    bfc = bfc_ref[...]

    h0 = jnp.zeros((B, H), jnp.float32)
    h1 = jnp.zeros((B, H), jnp.float32)

    hs = []
    # T is static -> fully unrolled; per step: 1 matmul (layer 0, K=H)
    # + 1 matmul (layer 1, K=2H) + 2 tanh.  No per-step stores.
    for t in range(T):
        h0 = jnp.tanh(x_all[t] +
                      jnp.dot(h0, whh0, preferred_element_type=jnp.float32))
        z = jnp.concatenate([h0, h1], axis=-1)            # (B, 2H), lane concat
        h1 = jnp.tanh(jnp.dot(z, w1, preferred_element_type=jnp.float32) + b1)
        hs.append(h1)

    # One big matmul + one contiguous store for the final Linear.
    h_all = jnp.concatenate(hs, axis=0)                   # (T*B, H)
    y = jnp.dot(h_all, wfc, preferred_element_type=jnp.float32) + bfc
    out_ref[...] = y.astype(out_ref.dtype)


def rnn_forward_pallas(x_proj_tbh, params):
    """x_proj_tbh: (T, B, H) float32 pre-projected inputs; returns (T*B, C)."""
    T, B, H = x_proj_tbh.shape
    C = NUM_CLASS

    inputs = (
        x_proj_tbh,
        params["whh0_t"],
        params["w1"],
        params["b1"],
        params["wfc_t"],
        params["bfc"],
    )
    vmem_spec = pl.BlockSpec(memory_space=pltpu.MemorySpace.VMEM)
    out = pl.pallas_call(
        rnn_fc_kernel,
        out_shape=jax.ShapeDtypeStruct((T * B, C), jnp.float32),
        in_specs=[vmem_spec] * len(inputs),
        out_specs=vmem_spec,
    )(*inputs)
    return out


# ---------------------------------------------------------------------------
# Full model forward (glue in plain JAX: table gather, layout transposes).
# ---------------------------------------------------------------------------
def model_forward(x_idx, params):
    """x_idx: (B, T) int32 token indices. Returns (B*T, NUM_CLASS)."""
    B, T = x_idx.shape
    # Folded Embedding + layer-0 input projection + b0 lookup (gather = glue).
    x_proj = params["table0"][x_idx]                       # (B, T, H)
    x_tbh = jnp.transpose(x_proj, (1, 0, 2)).astype(jnp.float32)   # (T, B, H)
    y_flat = rnn_forward_pallas(x_tbh, params)             # (T*B, C) time-major
    y_btc = jnp.transpose(y_flat.reshape(T, B, NUM_CLASS), (1, 0, 2))
    return y_btc.reshape(-1, NUM_CLASS)


# ---------------------------------------------------------------------------
# Deterministic parameter init (PyTorch shapes, synthetic values) + folding.
# ---------------------------------------------------------------------------
def init_params(key):
    ks = jax.random.split(key, 12)
    E, H, C, V = EMBEDDING_SIZE, HIDDEN_SIZE, NUM_CLASS, INPUT_SIZE

    def u(k, shape, scale):
        return jax.random.uniform(k, shape, jnp.float32, -scale, scale)

    s_rnn = 1.0 / np.sqrt(H)
    s_fc = 1.0 / np.sqrt(H)

    embed = jax.random.normal(ks[0], (V, E), jnp.float32)          # Embedding.weight (V, E)

    wih0 = u(ks[1], (H, E), s_rnn)                                 # weight_ih_l0
    whh0 = u(ks[2], (H, H), s_rnn)                                 # weight_hh_l0
    bih0 = u(ks[3], (H,), s_rnn)
    bhh0 = u(ks[4], (H,), s_rnn)
    wih1 = u(ks[5], (H, H), s_rnn)                                 # weight_ih_l1
    whh1 = u(ks[6], (H, H), s_rnn)                                 # weight_hh_l1
    bih1 = u(ks[7], (H,), s_rnn)
    bhh1 = u(ks[8], (H,), s_rnn)
    wfc = u(ks[9], (C, H), s_fc)                                   # fc.weight
    bfc = u(ks[10], (C,), s_fc)                                    # fc.bias

    # --- folded / pre-transposed forms consumed by the kernel ---------------
    # table0[v] = embed[v] @ wih0.T + (bih0 + bhh0)    shape (V, H)
    table0 = embed @ wih0.T + (bih0 + bhh0)[None, :]
    # layer-1: [x ; h] @ [wih1.T ; whh1.T]             shape (2H, H)
    w1 = jnp.concatenate([wih1.T, whh1.T], axis=0)

    return {
        # raw weights (kept for the pure-JAX reference)
        "embed": embed,
        "wih0": wih0, "whh0": whh0, "bih0": bih0, "bhh0": bhh0,
        "wih1": wih1, "whh1": whh1, "bih1": bih1, "bhh1": bhh1,
        "wfc": wfc, "bfc_raw": bfc,
        # folded forms for the kernel
        "table0": table0,
        "whh0_t": whh0.T,
        "w1": w1,
        "b1": (bih1 + bhh1).reshape(1, H),
        "wfc_t": wfc.T,
        "bfc": bfc.reshape(1, C),
    }


# ---------------------------------------------------------------------------
# Pure-JAX reference for correctness checking (un-folded math).
# ---------------------------------------------------------------------------
def model_forward_ref(x_idx, params):
    B, T = x_idx.shape
    x_emb = params["embed"][x_idx]                       # (B, T, E)
    h0 = jnp.zeros((B, HIDDEN_SIZE), jnp.float32)
    h1 = jnp.zeros((B, HIDDEN_SIZE), jnp.float32)
    outs = []
    for t in range(T):
        x_t = x_emb[:, t, :]
        h0 = jnp.tanh(x_t @ params["wih0"].T + params["bih0"]
                      + h0 @ params["whh0"].T + params["bhh0"])
        h1 = jnp.tanh(h0 @ params["wih1"].T + params["bih1"]
                      + h1 @ params["whh1"].T + params["bhh1"])
        outs.append(h1 @ params["wfc"].T + params["bfc_raw"])
    y = jnp.stack(outs, axis=1)                          # (B, T, C)
    return y.reshape(-1, NUM_CLASS)


if __name__ == "__main__":
    key = jax.random.PRNGKey(0)
    pkey, xkey = jax.random.split(key)
    params = init_params(pkey)

    B, T = 2, 8
    x_idx = jax.random.randint(xkey, (B, T), 0, INPUT_SIZE, dtype=jnp.int32)

    out = model_forward(x_idx, params)
    out = jax.block_until_ready(out)

    ref = model_forward_ref(x_idx, params)
    assert out.shape == (B * T, NUM_CLASS), out.shape
    np.testing.assert_allclose(np.asarray(out), np.asarray(ref), rtol=1e-5, atol=1e-5)

    print("KERNEL_OK")
</pallas_src>

<mosaic_0001>
module attributes {stable_mosaic.version = 11 : i64} {
  func.func @rnn_fc_kernel(%arg0: memref<8x2x8xf32, #tpu.memory_space<vmem>>, %arg1: memref<8x8xf32, #tpu.memory_space<vmem>>, %arg2: memref<16x8xf32, #tpu.memory_space<vmem>>, %arg3: memref<1x8xf32, #tpu.memory_space<vmem>>, %arg4: memref<8x4xf32, #tpu.memory_space<vmem>>, %arg5: memref<1x4xf32, #tpu.memory_space<vmem>>, %arg6: memref<16x4xf32, #tpu.memory_space<vmem>>) attributes {dimension_semantics = [], scalar_prefetch = 0 : i64, scratch_operands = 0 : i64, tpu.core_type = #tpu.core_type<tc>} {
    %c0 = arith.constant 0 : index
    %c0_0 = arith.constant 0 : index
    %c0_1 = arith.constant 0 : index
    %0 = vector.load %arg0[%c0, %c0_0, %c0_1] : memref<8x2x8xf32, #tpu.memory_space<vmem>>, vector<8x2x8xf32>
    %c0_2 = arith.constant 0 : index
    %c0_3 = arith.constant 0 : index
    %1 = vector.load %arg1[%c0_2, %c0_3] : memref<8x8xf32, #tpu.memory_space<vmem>>, vector<8x8xf32>
    %c0_4 = arith.constant 0 : index
    %c0_5 = arith.constant 0 : index
    %2 = vector.load %arg2[%c0_4, %c0_5] : memref<16x8xf32, #tpu.memory_space<vmem>>, vector<16x8xf32>
    %c0_6 = arith.constant 0 : index
    %c0_7 = arith.constant 0 : index
    %3 = vector.load %arg3[%c0_6, %c0_7] : memref<1x8xf32, #tpu.memory_space<vmem>>, vector<1x8xf32>
    %4 = vector.shape_cast %3 : vector<1x8xf32> to vector<1x8xf32>
    %5 = vector.broadcast %4 : vector<1x8xf32> to vector<2x8xf32>
    %c0_8 = arith.constant 0 : index
    %c0_9 = arith.constant 0 : index
    %6 = vector.load %arg4[%c0_8, %c0_9] : memref<8x4xf32, #tpu.memory_space<vmem>>, vector<8x4xf32>
    %c0_10 = arith.constant 0 : index
    %c0_11 = arith.constant 0 : index
    %7 = vector.load %arg5[%c0_10, %c0_11] : memref<1x4xf32, #tpu.memory_space<vmem>>, vector<1x4xf32>
    %cst = arith.constant 0.000000e+00 : f32
    %8 = vector.broadcast %cst : f32 to vector<2x8xf32>
    %cst_12 = arith.constant 0.000000e+00 : f32
    %9 = vector.broadcast %cst_12 : f32 to vector<2x8xf32>
    %10 = vector.extract_strided_slice %0 {offsets = [0, 0, 0], sizes = [1, 2, 8], strides = [1, 1, 1]} : vector<8x2x8xf32> to vector<1x2x8xf32>
    %11 = vector.shape_cast %10 : vector<1x2x8xf32> to vector<2x8xf32>
    %cst_13 = arith.constant dense<0.000000e+00> : vector<2x8xf32>
    %12 = tpu.matmul %8, %1, %cst_13 {dimension_numbers = #tpu.dot_dimension_numbers<[1], [0], [0], [1], [0, 0, 1, 1], [], []>} : vector<2x8xf32>, vector<8x8xf32>, vector<2x8xf32> -> vector<2x8xf32>
    %13 = arith.addf %11, %12 : vector<2x8xf32>
    %14 = math.tanh %13 : vector<2x8xf32>
    %15 = tpu.concatenate %14, %9 in 1 : vector<2x8xf32>, vector<2x8xf32> -> vector<2x16xf32>
    %cst_14 = arith.constant dense<0.000000e+00> : vector<2x8xf32>
    %16 = tpu.matmul %15, %2, %cst_14 {dimension_numbers = #tpu.dot_dimension_numbers<[1], [0], [0], [1], [0, 0, 1, 1], [], []>} : vector<2x16xf32>, vector<16x8xf32>, vector<2x8xf32> -> vector<2x8xf32>
    %17 = arith.addf %16, %5 : vector<2x8xf32>
    %18 = math.tanh %17 : vector<2x8xf32>
    %19 = vector.extract_strided_slice %0 {offsets = [1, 0, 0], sizes = [1, 2, 8], strides = [1, 1, 1]} : vector<8x2x8xf32> to vector<1x2x8xf32>
    %20 = vector.shape_cast %19 : vector<1x2x8xf32> to vector<2x8xf32>
    %cst_15 = arith.constant dense<0.000000e+00> : vector<2x8xf32>
    %21 = tpu.matmul %14, %1, %cst_15 {dimension_numbers = #tpu.dot_dimension_numbers<[1], [0], [0], [1], [0, 0, 1, 1], [], []>} : vector<2x8xf32>, vector<8x8xf32>, vector<2x8xf32> -> vector<2x8xf32>
    %22 = arith.addf %20, %21 : vector<2x8xf32>
    %23 = math.tanh %22 : vector<2x8xf32>
    %24 = tpu.concatenate %23, %18 in 1 : vector<2x8xf32>, vector<2x8xf32> -> vector<2x16xf32>
    %cst_16 = arith.constant dense<0.000000e+00> : vector<2x8xf32>
    %25 = tpu.matmul %24, %2, %cst_16 {dimension_numbers = #tpu.dot_dimension_numbers<[1], [0], [0], [1], [0, 0, 1, 1], [], []>} : vector<2x16xf32>, vector<16x8xf32>, vector<2x8xf32> -> vector<2x8xf32>
    %26 = arith.addf %25, %5 : vector<2x8xf32>
    %27 = math.tanh %26 : vector<2x8xf32>
    %28 = vector.extract_strided_slice %0 {offsets = [2, 0, 0], sizes = [1, 2, 8], strides = [1, 1, 1]} : vector<8x2x8xf32> to vector<1x2x8xf32>
    %29 = vector.shape_cast %28 : vector<1x2x8xf32> to vector<2x8xf32>
    %cst_17 = arith.constant dense<0.000000e+00> : vector<2x8xf32>
    %30 = tpu.matmul %23, %1, %cst_17 {dimension_numbers = #tpu.dot_dimension_numbers<[1], [0], [0], [1], [0, 0, 1, 1], [], []>} : vector<2x8xf32>, vector<8x8xf32>, vector<2x8xf32> -> vector<2x8xf32>
    %31 = arith.addf %29, %30 : vector<2x8xf32>
    %32 = math.tanh %31 : vector<2x8xf32>
    %33 = tpu.concatenate %32, %27 in 1 : vector<2x8xf32>, vector<2x8xf32> -> vector<2x16xf32>
    %cst_18 = arith.constant dense<0.000000e+00> : vector<2x8xf32>
    %34 = tpu.matmul %33, %2, %cst_18 {dimension_numbers = #tpu.dot_dimension_numbers<[1], [0], [0], [1], [0, 0, 1, 1], [], []>} : vector<2x16xf32>, vector<16x8xf32>, vector<2x8xf32> -> vector<2x8xf32>
    %35 = arith.addf %34, %5 : vector<2x8xf32>
    %36 = math.tanh %35 : vector<2x8xf32>
    %37 = vector.extract_strided_slice %0 {offsets = [3, 0, 0], sizes = [1, 2, 8], strides = [1, 1, 1]} : vector<8x2x8xf32> to vector<1x2x8xf32>
    %38 = vector.shape_cast %37 : vector<1x2x8xf32> to vector<2x8xf32>
    %cst_19 = arith.constant dense<0.000000e+00> : vector<2x8xf32>
    %39 = tpu.matmul %32, %1, %cst_19 {dimension_numbers = #tpu.dot_dimension_numbers<[1], [0], [0], [1], [0, 0, 1, 1], [], []>} : vector<2x8xf32>, vector<8x8xf32>, vector<2x8xf32> -> vector<2x8xf32>
    %40 = arith.addf %38, %39 : vector<2x8xf32>
    %41 = math.tanh %40 : vector<2x8xf32>
    %42 = tpu.concatenate %41, %36 in 1 : vector<2x8xf32>, vector<2x8xf32> -> vector<2x16xf32>
    %cst_20 = arith.constant dense<0.000000e+00> : vector<2x8xf32>
    %43 = tpu.matmul %42, %2, %cst_20 {dimension_numbers = #tpu.dot_dimension_numbers<[1], [0], [0], [1], [0, 0, 1, 1], [], []>} : vector<2x16xf32>, vector<16x8xf32>, vector<2x8xf32> -> vector<2x8xf32>
    %44 = arith.addf %43, %5 : vector<2x8xf32>
    %45 = math.tanh %44 : vector<2x8xf32>
    %46 = vector.extract_strided_slice %0 {offsets = [4, 0, 0], sizes = [1, 2, 8], strides = [1, 1, 1]} : vector<8x2x8xf32> to vector<1x2x8xf32>
    %47 = vector.shape_cast %46 : vector<1x2x8xf32> to vector<2x8xf32>
    %cst_21 = arith.constant dense<0.000000e+00> : vector<2x8xf32>
    %48 = tpu.matmul %41, %1, %cst_21 {dimension_numbers = #tpu.dot_dimension_numbers<[1], [0], [0], [1], [0, 0, 1, 1], [], []>} : vector<2x8xf32>, vector<8x8xf32>, vector<2x8xf32> -> vector<2x8xf32>
    %49 = arith.addf %47, %48 : vector<2x8xf32>
    %50 = math.tanh %49 : vector<2x8xf32>
    %51 = tpu.concatenate %50, %45 in 1 : vector<2x8xf32>, vector<2x8xf32> -> vector<2x16xf32>
    %cst_22 = arith.constant dense<0.000000e+00> : vector<2x8xf32>
    %52 = tpu.matmul %51, %2, %cst_22 {dimension_numbers = #tpu.dot_dimension_numbers<[1], [0], [0], [1], [0, 0, 1, 1], [], []>} : vector<2x16xf32>, vector<16x8xf32>, vector<2x8xf32> -> vector<2x8xf32>
    %53 = arith.addf %52, %5 : vector<2x8xf32>
    %54 = math.tanh %53 : vector<2x8xf32>
    %55 = vector.extract_strided_slice %0 {offsets = [5, 0, 0], sizes = [1, 2, 8], strides = [1, 1, 1]} : vector<8x2x8xf32> to vector<1x2x8xf32>
    %56 = vector.shape_cast %55 : vector<1x2x8xf32> to vector<2x8xf32>
    %cst_23 = arith.constant dense<0.000000e+00> : vector<2x8xf32>
    %57 = tpu.matmul %50, %1, %cst_23 {dimension_numbers = #tpu.dot_dimension_numbers<[1], [0], [0], [1], [0, 0, 1, 1], [], []>} : vector<2x8xf32>, vector<8x8xf32>, vector<2x8xf32> -> vector<2x8xf32>
    %58 = arith.addf %56, %57 : vector<2x8xf32>
    %59 = math.tanh %58 : vector<2x8xf32>
    %60 = tpu.concatenate %59, %54 in 1 : vector<2x8xf32>, vector<2x8xf32> -> vector<2x16xf32>
    %cst_24 = arith.constant dense<0.000000e+00> : vector<2x8xf32>
    %61 = tpu.matmul %60, %2, %cst_24 {dimension_numbers = #tpu.dot_dimension_numbers<[1], [0], [0], [1], [0, 0, 1, 1], [], []>} : vector<2x16xf32>, vector<16x8xf32>, vector<2x8xf32> -> vector<2x8xf32>
    %62 = arith.addf %61, %5 : vector<2x8xf32>
    %63 = math.tanh %62 : vector<2x8xf32>
    %64 = vector.extract_strided_slice %0 {offsets = [6, 0, 0], sizes = [1, 2, 8], strides = [1, 1, 1]} : vector<8x2x8xf32> to vector<1x2x8xf32>
    %65 = vector.shape_cast %64 : vector<1x2x8xf32> to vector<2x8xf32>
    %cst_25 = arith.constant dense<0.000000e+00> : vector<2x8xf32>
    %66 = tpu.matmul %59, %1, %cst_25 {dimension_numbers = #tpu.dot_dimension_numbers<[1], [0], [0], [1], [0, 0, 1, 1], [], []>} : vector<2x8xf32>, vector<8x8xf32>, vector<2x8xf32> -> vector<2x8xf32>
    %67 = arith.addf %65, %66 : vector<2x8xf32>
    %68 = math.tanh %67 : vector<2x8xf32>
    %69 = tpu.concatenate %68, %63 in 1 : vector<2x8xf32>, vector<2x8xf32> -> vector<2x16xf32>
    %cst_26 = arith.constant dense<0.000000e+00> : vector<2x8xf32>
    %70 = tpu.matmul %69, %2, %cst_26 {dimension_numbers = #tpu.dot_dimension_numbers<[1], [0], [0], [1], [0, 0, 1, 1], [], []>} : vector<2x16xf32>, vector<16x8xf32>, vector<2x8xf32> -> vector<2x8xf32>
    %71 = arith.addf %70, %5 : vector<2x8xf32>
    %72 = math.tanh %71 : vector<2x8xf32>
    %73 = vector.extract_strided_slice %0 {offsets = [7, 0, 0], sizes = [1, 2, 8], strides = [1, 1, 1]} : vector<8x2x8xf32> to vector<1x2x8xf32>
    %74 = vector.shape_cast %73 : vector<1x2x8xf32> to vector<2x8xf32>
    %cst_27 = arith.constant dense<0.000000e+00> : vector<2x8xf32>
    %75 = tpu.matmul %68, %1, %cst_27 {dimension_numbers = #tpu.dot_dimension_numbers<[1], [0], [0], [1], [0, 0, 1, 1], [], []>} : vector<2x8xf32>, vector<8x8xf32>, vector<2x8xf32> -> vector<2x8xf32>
    %76 = arith.addf %74, %75 : vector<2x8xf32>
    %77 = math.tanh %76 : vector<2x8xf32>
    %78 = tpu.concatenate %77, %72 in 1 : vector<2x8xf32>, vector<2x8xf32> -> vector<2x16xf32>
    %cst_28 = arith.constant dense<0.000000e+00> : vector<2x8xf32>
    %79 = tpu.matmul %78, %2, %cst_28 {dimension_numbers = #tpu.dot_dimension_numbers<[1], [0], [0], [1], [0, 0, 1, 1], [], []>} : vector<2x16xf32>, vector<16x8xf32>, vector<2x8xf32> -> vector<2x8xf32>
    %80 = arith.addf %79, %5 : vector<2x8xf32>
    %81 = math.tanh %80 : vector<2x8xf32>
    %82 = tpu.concatenate %18, %27, %36, %45, %54, %63, %72, %81 in 0 : vector<2x8xf32>, vector<2x8xf32>, vector<2x8xf32>, vector<2x8xf32>, vector<2x8xf32>, vector<2x8xf32>, vector<2x8xf32>, vector<2x8xf32> -> vector<16x8xf32>
    %cst_29 = arith.constant dense<0.000000e+00> : vector<16x4xf32>
    %83 = tpu.matmul %82, %6, %cst_29 {dimension_numbers = #tpu.dot_dimension_numbers<[1], [0], [0], [1], [0, 0, 1, 1], [], []>} : vector<16x8xf32>, vector<8x4xf32>, vector<16x4xf32> -> vector<16x4xf32>
    %84 = vector.broadcast %7 : vector<1x4xf32> to vector<16x4xf32>
    %85 = arith.addf %83, %84 : vector<16x4xf32>
    %c0_30 = arith.constant 0 : index
    %c0_31 = arith.constant 0 : index
    %86 = vector.load %arg6[%c0_30, %c0_31] : memref<16x4xf32, #tpu.memory_space<vmem>>, vector<16x4xf32>
    tpu.vector_store %arg6[%c0_30, %c0_31], %85 {strides = array<i32>} : memref<16x4xf32, #tpu.memory_space<vmem>>, vector<16x4xf32>,
    return
  }
}

</mosaic_0001>

<llo_original>
// kernel: tpu_custom_call.1
$region0: #{tpu_custom_call.1}
  #allocation0 [shape = 'u32[]', space=smem, size = 0x4, offset = 0x4, fixed_abs, tag = 'smem constant byte address 0x4 - core index']
  #allocation1 [shape = 'u32[144,128]{1,0:T(1,128)}', space=vmem, size = 0x12000, scoped, tag = 'internal scratch']
  %s0 = inlined_call_operand.vmem [shape: f32[8,2,8], index: 0, kind: input, shape index: {}]
  %s1 = inlined_call_operand.vmem [shape: f32[8,8], index: 1, kind: input, shape index: {}]
  %s2 = inlined_call_operand.vmem [shape: f32[16,8], index: 2, kind: input, shape index: {}]
  %s3 = inlined_call_operand.vmem [shape: f32[1,8], index: 3, kind: input, shape index: {}]
  %s4 = inlined_call_operand.vmem [shape: f32[8,4], index: 4, kind: input, shape index: {}]
  %s5 = inlined_call_operand.vmem [shape: f32[1,4], index: 5, kind: input, shape index: {}]
  %s6 = inlined_call_operand.vmem [shape: f32[16,4], index: 6, kind: output, shape index: {}]
  %s7 = sld [smem:[#allocation0]]
  $region34: #{tpu_custom_call.1} parent=0
    _
  %s9 = ssub.s32 1, %s7
  %s10 = scalar_select 0, %s9, %s7
  // Predicated region
  $region2: #{tpu_custom_call.1} parent=0 // pred_check
    _
  $region3: #{tpu_custom_call.1} parent=0 // pred_check_branch
    %12 = sbr.rel (0) target = $region5
  $region4: #{tpu_custom_call.1} parent=0 // pred_region
    _
  $region5: #{tpu_custom_call.1} parent=0 // pred_fallthru
    _
  // Predicated region
  $region6: #{tpu_custom_call.1} parent=0 // pred_check
    _
  $region7: #{tpu_custom_call.1} parent=0 // pred_check_branch
    %14 = sbr.rel (0) target = $region9
  $region8: #{tpu_custom_call.1} parent=0 // pred_region
    _
  $region9: #{tpu_custom_call.1} parent=0 // pred_fallthru
    _
  // Predicated region
  $region10: #{tpu_custom_call.1} parent=0 // pred_check
    _
  $region11: #{tpu_custom_call.1} parent=0 // pred_check_branch
    %16 = sbr.rel (0) target = $region13
  $region12: #{tpu_custom_call.1} parent=0 // pred_region
    _
  $region13: #{tpu_custom_call.1} parent=0 // pred_fallthru
    _
  // Predicated region
  $region14: #{tpu_custom_call.1} parent=0 // pred_check
    _
  $region15: #{tpu_custom_call.1} parent=0 // pred_check_branch
    %18 = sbr.rel (0) target = $region17
  $region16: #{tpu_custom_call.1} parent=0 // pred_region
    _
  $region17: #{tpu_custom_call.1} parent=0 // pred_fallthru
    _
  // Predicated region
  $region18: #{tpu_custom_call.1} parent=0 // pred_check
    _
  $region19: #{tpu_custom_call.1} parent=0 // pred_check_branch
    %20 = sbr.rel (0) target = $region21
  $region20: #{tpu_custom_call.1} parent=0 // pred_region
    _
  $region21: #{tpu_custom_call.1} parent=0 // pred_fallthru
    _
  // Predicated region
  $region22: #{tpu_custom_call.1} parent=0 // pred_check
    _
  $region23: #{tpu_custom_call.1} parent=0 // pred_check_branch
    %22 = sbr.rel (0) target = $region25
  $region24: #{tpu_custom_call.1} parent=0 // pred_region
    _
  $region25: #{tpu_custom_call.1} parent=0 // pred_fallthru
    _
  %v23 = vld [vmem:[%s0] sm:$0x3]
  %v24 = vld [vmem:[%s0 + $0x2] sm:$0x3]
  %v25 = vld [vmem:[%s0 + $0x4] sm:$0x3]
  %v26 = vld [vmem:[%s0 + $0x6] sm:$0x3]
  %v27 = vld [vmem:[%s0 + $0x8] sm:$0x3]
  %v28 = vld [vmem:[%s0 + $0xa] sm:$0x3]
  %v29 = vld [vmem:[%s0 + $0xc] sm:$0x3]
  %v30 = vld [vmem:[%s0 + $0xe] sm:$0x3]
  %v31 = vld [vmem:[%s1] sm:$0xff]
  %v32 = vld [vmem:[%s2] sm:$0xff]
  %v33 = vld [vmem:[%s2 + $0x8] sm:$0xff]
  %v34 = vld [vmem:[%s3] sm:$0x1]
  %v36 = vlaneseq
  %v37 = vshrl.u32 %v36, 7
  %v38 = vsub.s32 0, %v37
  %v39 = vrot.slane %v34, %v38
  %v41 = vld [vmem:[%s4] sm:$0xff]
  %v42 = vld [vmem:[%s5] sm:$0x1]
  %vm43 = vcmask 64512
  %v45 = vsel %vm43, 0.0, 0
  %47 = vmatprep.subr.mxu0 0.0
  %48 = vmatpush1.msra.mxu0 %v31
  %49 = vmatprep.subr.mxu0 0.0
  %50 = vmatpush1.msra.mxu0 0.0
  %51 = vmatprep.subr.mxu0 0.0
  %52 = vmatpush1.msra.mxu0 0.0
  %53 = vmatprep.subr.mxu0 0.0
  %54 = vmatpush1.msra.mxu0 0.0
  %55 = vmatprep.subr.mxu0 0.0
  %56 = vmatpush1.msra.mxu0 0.0
  %57 = vmatprep.subr.mxu0 0.0
  %58 = vmatpush1.msra.mxu0 0.0
  %59 = vmatprep.subr.mxu0 0.0
  %60 = vmatpush1.msra.mxu0 0.0
  %61 = vmatprep.subr.mxu0 0.0
  %62 = vmatpush1.msra.mxu0 0.0
  %63 = vmatprep.subr.mxu0 0.0
  %64 = vmatpush1.msra.mxu0 0.0
  %65 = vmatprep.subr.mxu0 0.0
  %66 = vmatpush1.msra.mxu0 0.0
  %67 = vmatprep.subr.mxu0 0.0
  %68 = vmatpush1.msra.mxu0 0.0
  %69 = vmatprep.subr.mxu0 0.0
  %70 = vmatpush1.msra.mxu0 0.0
  %71 = vmatprep.subr.mxu0 0.0
  %72 = vmatpush1.msra.mxu0 0.0
  %73 = vmatprep.subr.mxu0 0.0
  %74 = vmatpush1.msra.mxu0 0.0
  %75 = vmatprep.subr.mxu0 0.0
  %76 = vmatpush1.msra.mxu0 0.0
  %77 = vmatprep.subr.mxu0 0.0
  %78 = vmatpush1.msra.mxu0 0.0
  %79 = vmatprep.subr.mxu0 0.0
  %80 = vmatpush1.msra.mxu0 0.0
  %81 = vmatprep.subr.mxu0 0.0
  %82 = vmatpush1.msra.mxu0 0.0
  %83 = vmatprep.subr.mxu0 0.0
  %84 = vmatpush1.msra.mxu0 0.0
  %85 = vmatprep.subr.mxu0 0.0
  %86 = vmatpush1.msra.mxu0 0.0
  %87 = vmatprep.subr.mxu0 0.0
  %88 = vmatpush1.msra.mxu0 0.0
  %89 = vmatprep.subr.mxu0 0.0
  %90 = vmatpush1.msra.mxu0 0.0
  %91 = vmatprep.subr.mxu0 0.0
  %92 = vmatpush1.msra.mxu0 0.0
  %93 = vmatprep.subr.mxu0 0.0
  %94 = vmatpush1.msra.mxu0 0.0
  %95 = vmatprep.subr.mxu0 0.0
  %96 = vmatpush1.msra.mxu0 0.0
  %97 = vmatprep.subr.mxu0 0.0
  %98 = vmatpush1.msra.mxu0 0.0
  %99 = vmatprep.subr.mxu0 0.0
  %100 = vmatpush1.msra.mxu0 0.0
  %101 = vmatprep.subr.mxu0 0.0
  %102 = vmatpush1.msra.mxu0 0.0
  %103 = vmatprep.subr.mxu0 0.0
  %104 = vmatpush1.msra.mxu0 0.0
  %105 = vmatprep.subr.mxu0 0.0
  %106 = vmatpush1.msra.mxu0 0.0
  %107 = vmatprep.subr.mxu0 0.0
  %108 = vmatpush1.msra.mxu0 0.0
  %109 = vmatprep.subr.mxu0 0.0
  %110 = vmatpush1.msra.mxu0 0.0
  %111 = vmatprep.mubr.f32.mxu0 0.0
  %112 = vmatmul.mubr.f32.gmra.mrb[0].mxu0 %v45
  %v113 = vpop.f32.mrb[0].mxu0
  %v114 = vadd.f32 0.0, %v113
  %v115 = vpop.f32.mrb[0].mxu0
  %116 = vdwg.mxu0
  %v117 = vadd.f32 %v23, %v114
  %v118 = vtanh.pop %v117
  %v119 = vsel %vm43, %v118, 0.0
  %vm120 = vcmask 130048
  %v122 = vsel %vm120, %v119, 0
  %124 = vmatprep.subr.mxu0 0.0
  %125 = vmatpush1.msra.mxu0 %v32
  %126 = vmatprep.subr.mxu0 0.0
  %127 = vmatpush1.msra.mxu0 %v33
  %128 = vmatprep.subr.mxu0 0.0
  %129 = vmatpush1.msra.mxu0 0.0
  %130 = vmatprep.subr.mxu0 0.0
  %131 = vmatpush1.msra.mxu0 0.0
  %132 = vmatprep.subr.mxu0 0.0
  %133 = vmatpush1.msra.mxu0 0.0
  %134 = vmatprep.subr.mxu0 0.0
  %135 = vmatpush1.msra.mxu0 0.0
  %136 = vmatprep.subr.mxu0 0.0
  %137 = vmatpush1.msra.mxu0 0.0
  %138 = vmatprep.subr.mxu0 0.0
  %139 = vmatpush1.msra.mxu0 0.0
  %140 = vmatprep.subr.mxu0 0.0
  %141 = vmatpush1.msra.mxu0 0.0
  %142 = vmatprep.subr.mxu0 0.0
  %143 = vmatpush1.msra.mxu0 0.0
  %144 = vmatprep.subr.mxu0 0.0
  %145 = vmatpush1.msra.mxu0 0.0
  %146 = vmatprep.subr.mxu0 0.0
  %147 = vmatpush1.msra.mxu0 0.0
  %148 = vmatprep.subr.mxu0 0.0
  %149 = vmatpush1.msra.mxu0 0.0
  %150 = vmatprep.subr.mxu0 0.0
  %151 = vmatpush1.msra.mxu0 0.0
  %152 = vmatprep.subr.mxu0 0.0
  %153 = vmatpush1.msra.mxu0 0.0
  %154 = vmatprep.subr.mxu0 0.0
  %155 = vmatpush1.msra.mxu0 0.0
  %156 = vmatprep.subr.mxu0 0.0
  %157 = vmatpush1.msra.mxu0 0.0
  %158 = vmatprep.subr.mxu0 0.0
  %159 = vmatpush1.msra.mxu0 0.0
  %160 = vmatprep.subr.mxu0 0.0
  %161 = vmatpush1.msra.mxu0 0.0
  %162 = vmatprep.subr.mxu0 0.0
  %163 = vmatpush1.msra.mxu0 0.0
  %164 = vmatprep.subr.mxu0 0.0
  %165 = vmatpush1.msra.mxu0 0.0
  %166 = vmatprep.subr.mxu0 0.0
  %167 = vmatpush1.msra.mxu0 0.0
  %168 = vmatprep.subr.mxu0 0.0
  %169 = vmatpush1.msra.mxu0 0.0
  %170 = vmatprep.subr.mxu0 0.0
  %171 = vmatpush1.msra.mxu0 0.0
  %172 = vmatprep.subr.mxu0 0.0
  %173 = vmatpush1.msra.mxu0 0.0
  %174 = vmatprep.subr.mxu0 0.0
  %175 = vmatpush1.msra.mxu0 0.0
  %176 = vmatprep.subr.mxu0 0.0
  %177 = vmatpush1.msra.mxu0 0.0
  %178 = vmatprep.subr.mxu0 0.0
  %179 = vmatpush1.msra.mxu0 0.0
  %180 = vmatprep.subr.mxu0 0.0
  %181 = vmatpush1.msra.mxu0 0.0
  %182 = vmatprep.subr.mxu0 0.0
  %183 = vmatpush1.msra.mxu0 0.0
  %184 = vmatprep.subr.mxu0 0.0
  %185 = vmatpush1.msra.mxu0 0.0
  %186 = vmatprep.subr.mxu0 0.0
  %187 = vmatpush1.msra.mxu0 0.0
  %188 = vmatprep.mubr.f32.mxu0 0.0
  %189 = vmatmul.mubr.f32.gmra.mrb[0].mxu0 %v122
  %v190 = vpop.f32.mrb[0].mxu0
  %v191 = vadd.f32 %v39, %v190
  %v192 = vpop.f32.mrb[0].mxu0
  %193 = vdwg.mxu0
  %v194 = vtanh.pop %v191
  %v196 = vsel %vm43, %v118, 0
  %198 = vmatprep.subr.mxu0 0.0
  %199 = vmatpush1.msra.mxu0 %v31
  %200 = vmatprep.subr.mxu0 0.0
  %201 = vmatpush1.msra.mxu0 0.0
  %202 = vmatprep.subr.mxu0 0.0
  %203 = vmatpush1.msra.mxu0 0.0
  %204 = vmatprep.subr.mxu0 0.0
  %205 = vmatpush1.msra.mxu0 0.0
  %206 = vmatprep.subr.mxu0 0.0
  %207 = vmatpush1.msra.mxu0 0.0
  %208 = vmatprep.subr.mxu0 0.0
  %209 = vmatpush1.msra.mxu0 0.0
  %210 = vmatprep.subr.mxu0 0.0
  %211 = vmatpush1.msra.mxu0 0.0
  %212 = vmatprep.subr.mxu0 0.0
  %213 = vmatpush1.msra.mxu0 0.0
  %214 = vmatprep.subr.mxu0 0.0
  %215 = vmatpush1.msra.mxu0 0.0
  %216 = vmatprep.subr.mxu0 0.0
  %217 = vmatpush1.msra.mxu0 0.0
  %218 = vmatprep.subr.mxu0 0.0
  %219 = vmatpush1.msra.mxu0 0.0
  %220 = vmatprep.subr.mxu0 0.0
  %221 = vmatpush1.msra.mxu0 0.0
  %222 = vmatprep.subr.mxu0 0.0
  %223 = vmatpush1.msra.mxu0 0.0
  %224 = vmatprep.subr.mxu0 0.0
  %225 = vmatpush1.msra.mxu0 0.0
  %226 = vmatprep.subr.mxu0 0.0
  %227 = vmatpush1.msra.mxu0 0.0
  %228 = vmatprep.subr.mxu0 0.0
  %229 = vmatpush1.msra.mxu0 0.0
  %230 = vmatprep.subr.mxu0 0.0
  %231 = vmatpush1.msra.mxu0 0.0
  %232 = vmatprep.subr.mxu0 0.0
  %233 = vmatpush1.msra.mxu0 0.0
  %234 = vmatprep.subr.mxu0 0.0
  %235 = vmatpush1.msra.mxu0 0.0
  %236 = vmatprep.subr.mxu0 0.0
  %237 = vmatpush1.msra.mxu0 0.0
  %238 = vmatprep.subr.mxu0 0.0
  %239 = vmatpush1.msra.mxu0 0.0
  %240 = vmatprep.subr.mxu0 0.0
  %241 = vmatpush1.msra.mxu0 0.0
  %242 = vmatprep.subr.mxu0 0.0
  %243 = vmatpush1.msra.mxu0 0.0
  %244 = vmatprep.subr.mxu0 0.0
  %245 = vmatpush1.msra.mxu0 0.0
  %246 = vmatprep.subr.mxu0 0.0
  %247 = vmatpush1.msra.mxu0 0.0
  %248 = vmatprep.subr.mxu0 0.0
  %249 = vmatpush1.msra.mxu0 0.0
  %250 = vmatprep.subr.mxu0 0.0
  %251 = vmatpush1.msra.mxu0 0.0
  %252 = vmatprep.subr.mxu0 0.0
  %253 = vmatpush1.msra.mxu0 0.0
  %254 = vmatprep.subr.mxu0 0.0
  %255 = vmatpush1.msra.mxu0 0.0
  %256 = vmatprep.subr.mxu0 0.0
  %257 = vmatpush1.msra.mxu0 0.0
  %258 = vmatprep.subr.mxu0 0.0
  %259 = vmatpush1.msra.mxu0 0.0
  %260 = vmatprep.subr.mxu0 0.0
  %261 = vmatpush1.msra.mxu0 0.0
  %262 = vmatprep.mubr.f32.mxu0 0.0
  %263 = vmatmul.mubr.f32.gmra.mrb[0].mxu0 %v196
  %v264 = vpop.f32.mrb[0].mxu0
  %v265 = vadd.f32 0.0, %v264
  %v266 = vpop.f32.mrb[0].mxu0
  %267 = vdwg.mxu0
  %v268 = vadd.f32 %v24, %v265
  %v269 = vtanh.pop %v268
  %271 = vrot.lane.b32.xlu0 %v194, 8
  %v272 = vpop.permute.xlu0 %271
  %v274 = vsel %vm43, %v269, %v272
  %v276 = vsel %vm120, %v274, 0
  %278 = vmatprep.subr.mxu0 0.0
  %279 = vmatpush1.msra.mxu0 %v32
  %280 = vmatprep.subr.mxu0 0.0
  %281 = vmatpush1.msra.mxu0 %v33
  %282 = vmatprep.subr.mxu0 0.0
  %283 = vmatpush1.msra.mxu0 0.0
  %284 = vmatprep.subr.mxu0 0.0
  %285 = vmatpush1.msra.mxu0 0.0
  %286 = vmatprep.subr.mxu0 0.0
  %287 = vmatpush1.msra.mxu0 0.0
  %288 = vmatprep.subr.mxu0 0.0
  %289 = vmatpush1.msra.mxu0 0.0
  %290 = vmatprep.subr.mxu0 0.0
  %291 = vmatpush1.msra.mxu0 0.0
  %292 = vmatprep.subr.mxu0 0.0
  %293 = vmatpush1.msra.mxu0 0.0
  %294 = vmatprep.subr.mxu0 0.0
  %295 = vmatpush1.msra.mxu0 0.0
  %296 = vmatprep.subr.mxu0 0.0
  %297 = vmatpush1.msra.mxu0 0.0
  %298 = vmatprep.subr.mxu0 0.0
  %299 = vmatpush1.msra.mxu0 0.0
  %300 = vmatprep.subr.mxu0 0.0
  %301 = vmatpush1.msra.mxu0 0.0
  %302 = vmatprep.subr.mxu0 0.0
  %303 = vmatpush1.msra.mxu0 0.0
  %304 = vmatprep.subr.mxu0 0.0
  %305 = vmatpush1.msra.mxu0 0.0
  %306 = vmatprep.subr.mxu0 0.0
  %307 = vmatpush1.msra.mxu0 0.0
  %308 = vmatprep.subr.mxu0 0.0
  %309 = vmatpush1.msra.mxu0 0.0
  %310 = vmatprep.subr.mxu0 0.0
  %311 = vmatpush1.msra.mxu0 0.0
  %312 = vmatprep.subr.mxu0 0.0
  %313 = vmatpush1.msra.mxu0 0.0
  %314 = vmatprep.subr.mxu0 0.0
  %315 = vmatpush1.msra.mxu0 0.0
  %316 = vmatprep.subr.mxu0 0.0
  %317 = vmatpush1.msra.mxu0 0.0
  %318 = vmatprep.subr.mxu0 0.0
  %319 = vmatpush1.msra.mxu0 0.0
  %320 = vmatprep.subr.mxu0 0.0
  %321 = vmatpush1.msra.mxu0 0.0
  %322 = vmatprep.subr.mxu0 0.0
  %323 = vmatpush1.msra.mxu0 0.0
  %324 = vmatprep.subr.mxu0 0.0
  %325 = vmatpush1.msra.mxu0 0.0
  %326 = vmatprep.subr.mxu0 0.0
  %327 = vmatpush1.msra.mxu0 0.0
  %328 = vmatprep.subr.mxu0 0.0
  %329 = vmatpush1.msra.mxu0 0.0
  %330 = vmatprep.subr.mxu0 0.0
  %331 = vmatpush1.msra.mxu0 0.0
  %332 = vmatprep.subr.mxu0 0.0
  %333 = vmatpush1.msra.mxu0 0.0
  %334 = vmatprep.subr.mxu0 0.0
  %335 = vmatpush1.msra.mxu0 0.0
  %336 = vmatprep.subr.mxu0 0.0
  %337 = vmatpush1.msra.mxu0 0.0
  %338 = vmatprep.subr.mxu0 0.0
  %339 = vmatpush1.msra.mxu0 0.0
  %340 = vmatprep.subr.mxu0 0.0
  %341 = vmatpush1.msra.mxu0 0.0
  %342 = vmatprep.mubr.f32.mxu0 0.0
  %343 = vmatmul.mubr.f32.gmra.mrb[0].mxu0 %v276
  %v344 = vpop.f32.mrb[0].mxu0
  %v345 = vadd.f32 %v39, %v344
  %v346 = vpop.f32.mrb[0].mxu0
  %347 = vdwg.mxu0
  %v348 = vtanh.pop %v345
  %v350 = vsel %vm43, %v269, 0
  %352 = vmatprep.subr.mxu0 0.0
  %353 = vmatpush1.msra.mxu0 %v31
  %354 = vmatprep.subr.mxu0 0.0
  %355 = vmatpush1.msra.mxu0 0.0
  %356 = vmatprep.subr.mxu0 0.0
  %357 = vmatpush1.msra.mxu0 0.0
  %358 = vmatprep.subr.mxu0 0.0
  %359 = vmatpush1.msra.mxu0 0.0
  %360 = vmatprep.subr.mxu0 0.0
  %361 = vmatpush1.msra.mxu0 0.0
  %362 = vmatprep.subr.mxu0 0.0
  %363 = vmatpush1.msra.mxu0 0.0
  %364 = vmatprep.subr.mxu0 0.0
  %365 = vmatpush1.msra.mxu0 0.0
  %366 = vmatprep.subr.mxu0 0.0
  %367 = vmatpush1.msra.mxu0 0.0
  %368 = vmatprep.subr.mxu0 0.0
  %369 = vmatpush1.msra.mxu0 0.0
  %370 = vmatprep.subr.mxu0 0.0
  %371 = vmatpush1.msra.mxu0 0.0
  %372 = vmatprep.subr.mxu0 0.0
  %373 = vmatpush1.msra.mxu0 0.0
  %374 = vmatprep.subr.mxu0 0.0
  %375 = vmatpush1.msra.mxu0 0.0
  %376 = vmatprep.subr.mxu0 0.0
  %377 = vmatpush1.msra.mxu0 0.0
  %378 = vmatprep.subr.mxu0 0.0
  %379 = vmatpush1.msra.mxu0 0.0
  %380 = vmatprep.subr.mxu0 0.0
  %381 = vmatpush1.msra.mxu0 0.0
  %382 = vmatprep.subr.mxu0 0.0
  %383 = vmatpush1.msra.mxu0 0.0
  %384 = vmatprep.subr.mxu0 0.0
  %385 = vmatpush1.msra.mxu0 0.0
  %386 = vmatprep.subr.mxu0 0.0
  %387 = vmatpush1.msra.mxu0 0.0
  %388 = vmatprep.subr.mxu0 0.0
  %389 = vmatpush1.msra.mxu0 0.0
  %390 = vmatprep.subr.mxu0 0.0
  %391 = vmatpush1.msra.mxu0 0.0
  %392 = vmatprep.subr.mxu0 0.0
  %393 = vmatpush1.msra.mxu0 0.0
  %394 = vmatprep.subr.mxu0 0.0
  %395 = vmatpush1.msra.mxu0 0.0
  %396 = vmatprep.subr.mxu0 0.0
  %397 = vmatpush1.msra.mxu0 0.0
  %398 = vmatprep.subr.mxu0 0.0
  %399 = vmatpush1.msra.mxu0 0.0
  %400 = vmatprep.subr.mxu0 0.0
  %401 = vmatpush1.msra.mxu0 0.0
  %402 = vmatprep.subr.mxu0 0.0
  %403 = vmatpush1.msra.mxu0 0.0
  %404 = vmatprep.subr.mxu0 0.0
  %405 = vmatpush1.msra.mxu0 0.0
  %406 = vmatprep.subr.mxu0 0.0
  %407 = vmatpush1.msra.mxu0 0.0
  %408 = vmatprep.subr.mxu0 0.0
  %409 = vmatpush1.msra.mxu0 0.0
  %410 = vmatprep.subr.mxu0 0.0
  %411 = vmatpush1.msra.mxu0 0.0
  %412 = vmatprep.subr.mxu0 0.0
  %413 = vmatpush1.msra.mxu0 0.0
  %414 = vmatprep.subr.mxu0 0.0
  %415 = vmatpush1.msra.mxu0 0.0
  %416 = vmatprep.mubr.f32.mxu0 0.0
  %417 = vmatmul.mubr.f32.gmra.mrb[0].mxu0 %v350
  %v418 = vpop.f32.mrb[0].mxu0
  %v419 = vadd.f32 0.0, %v418
  %v420 = vpop.f32.mrb[0].mxu0
  %421 = vdwg.mxu0
  %v422 = vadd.f32 %v25, %v419
  %v423 = vtanh.pop %v422
  %425 = vrot.lane.b32.xlu0 %v348, 8
  %v426 = vpop.permute.xlu0 %425
  %v428 = vsel %vm43, %v423, %v426
  %v430 = vsel %vm120, %v428, 0
  %432 = vmatprep.subr.mxu0 0.0
  %433 = vmatpush1.msra.mxu0 %v32
  %434 = vmatprep.subr.mxu0 0.0
  %435 = vmatpush1.msra.mxu0 %v33
  %436 = vmatprep.subr.mxu0 0.0
  %437 = vmatpush1.msra.mxu0 0.0
  %438 = vmatprep.subr.mxu0 0.0
  %439 = vmatpush1.msra.mxu0 0.0
  %440 = vmatprep.subr.mxu0 0.0
  %441 = vmatpush1.msra.mxu0 0.0
  %442 = vmatprep.subr.mxu0 0.0
  %443 = vmatpush1.msra.mxu0 0.0
  %444 = vmatprep.subr.mxu0 0.0
  %445 = vmatpush1.msra.mxu0 0.0
  %446 = vmatprep.subr.mxu0 0.0
  %447 = vmatpush1.msra.mxu0 0.0
  %448 = vmatprep.subr.mxu0 0.0
  %449 = vmatpush1.msra.mxu0 0.0
  %450 = vmatprep.subr.mxu0 0.0
  %451 = vmatpush1.msra.mxu0 0.0
  %452 = vmatprep.subr.mxu0 0.0
  %453 = vmatpush1.msra.mxu0 0.0
  %454 = vmatprep.subr.mxu0 0.0
  %455 = vmatpush1.msra.mxu0 0.0
  %456 = vmatprep.subr.mxu0 0.0
  %457 = vmatpush1.msra.mxu0 0.0
  %458 = vmatprep.subr.mxu0 0.0
  %459 = vmatpush1.msra.mxu0 0.0
  %460 = vmatprep.subr.mxu0 0.0
  %461 = vmatpush1.msra.mxu0 0.0
  %462 = vmatprep.subr.mxu0 0.0
  %463 = vmatpush1.msra.mxu0 0.0
  %464 = vmatprep.subr.mxu0 0.0
  %465 = vmatpush1.msra.mxu0 0.0
  %466 = vmatprep.subr.mxu0 0.0
  %467 = vmatpush1.msra.mxu0 0.0
  %468 = vmatprep.subr.mxu0 0.0
  %469 = vmatpush1.msra.mxu0 0.0
  %470 = vmatprep.subr.mxu0 0.0
  %471 = vmatpush1.msra.mxu0 0.0
  %472 = vmatprep.subr.mxu0 0.0
  %473 = vmatpush1.msra.mxu0 0.0
  %474 = vmatprep.subr.mxu0 0.0
  %475 = vmatpush1.msra.mxu0 0.0
  %476 = vmatprep.subr.mxu0 0.0
  %477 = vmatpush1.msra.mxu0 0.0
  %478 = vmatprep.subr.mxu0 0.0
  %479 = vmatpush1.msra.mxu0 0.0
  %480 = vmatprep.subr.mxu0 0.0
  %481 = vmatpush1.msra.mxu0 0.0
  %482 = vmatprep.subr.mxu0 0.0
  %483 = vmatpush1.msra.mxu0 0.0
  %484 = vmatprep.subr.mxu0 0.0
  %485 = vmatpush1.msra.mxu0 0.0
  %486 = vmatprep.subr.mxu0 0.0
  %487 = vmatpush1.msra.mxu0 0.0
  %488 = vmatprep.subr.mxu0 0.0
  %489 = vmatpush1.msra.mxu0 0.0
  %490 = vmatprep.subr.mxu0 0.0
  %491 = vmatpush1.msra.mxu0 0.0
  %492 = vmatprep.subr.mxu0 0.0
  %493 = vmatpush1.msra.mxu0 0.0
  %494 = vmatprep.subr.mxu0 0.0
  %495 = vmatpush1.msra.mxu0 0.0
  %496 = vmatprep.mubr.f32.mxu0 0.0
  %497 = vmatmul.mubr.f32.gmra.mrb[0].mxu0 %v430
  %v498 = vpop.f32.mrb[0].mxu0
  %v499 = vadd.f32 %v39, %v498
  %v500 = vpop.f32.mrb[0].mxu0
  %501 = vdwg.mxu0
  %v502 = vtanh.pop %v499
  %v504 = vsel %vm43, %v423, 0
  %506 = vmatprep.subr.mxu0 0.0
  %507 = vmatpush1.msra.mxu0 %v31
  %508 = vmatprep.subr.mxu0 0.0
  %509 = vmatpush1.msra.mxu0 0.0
  %510 = vmatprep.subr.mxu0 0.0
  %511 = vmatpush1.msra.mxu0 0.0
  %512 = vmatprep.subr.mxu0 0.0
  %513 = vmatpush1.msra.mxu0 0.0
  %514 = vmatprep.subr.mxu0 0.0
  %515 = vmatpush1.msra.mxu0 0.0
  %516 = vmatprep.subr.mxu0 0.0
  %517 = vmatpush1.msra.mxu0 0.0
  %518 = vmatprep.subr.mxu0 0.0
  %519 = vmatpush1.msra.mxu0 0.0
  %520 = vmatprep.subr.mxu0 0.0
  %521 = vmatpush1.msra.mxu0 0.0
  %522 = vmatprep.subr.mxu0 0.0
  %523 = vmatpush1.msra.mxu0 0.0
  %524 = vmatprep.subr.mxu0 0.0
  %525 = vmatpush1.msra.mxu0 0.0
  %526 = vmatprep.subr.mxu0 0.0
  %527 = vmatpush1.msra.mxu0 0.0
  %528 = vmatprep.subr.mxu0 0.0
  %529 = vmatpush1.msra.mxu0 0.0
  %530 = vmatprep.subr.mxu0 0.0
  %531 = vmatpush1.msra.mxu0 0.0
  %532 = vmatprep.subr.mxu0 0.0
  %533 = vmatpush1.msra.mxu0 0.0
  %534 = vmatprep.subr.mxu0 0.0
  %535 = vmatpush1.msra.mxu0 0.0
  %536 = vmatprep.subr.mxu0 0.0
  %537 = vmatpush1.msra.mxu0 0.0
  %538 = vmatprep.subr.mxu0 0.0
  %539 = vmatpush1.msra.mxu0 0.0
  %540 = vmatprep.subr.mxu0 0.0
  %541 = vmatpush1.msra.mxu0 0.0
  %542 = vmatprep.subr.mxu0 0.0
  %543 = vmatpush1.msra.mxu0 0.0
  %544 = vmatprep.subr.mxu0 0.0
  %545 = vmatpush1.msra.mxu0 0.0
  %546 = vmatprep.subr.mxu0 0.0
  %547 = vmatpush1.msra.mxu0 0.0
  %548 = vmatprep.subr.mxu0 0.0
  %549 = vmatpush1.msra.mxu0 0.0
  %550 = vmatprep.subr.mxu0 0.0
  %551 = vmatpush1.msra.mxu0 0.0
  %552 = vmatprep.subr.mxu0 0.0
  %553 = vmatpush1.msra.mxu0 0.0
  %554 = vmatprep.subr.mxu0 0.0
  %555 = vmatpush1.msra.mxu0 0.0
  %556 = vmatprep.subr.mxu0 0.0
  %557 = vmatpush1.msra.mxu0 0.0
  %558 = vmatprep.subr.mxu0 0.0
  %559 = vmatpush1.msra.mxu0 0.0
  %560 = vmatprep.subr.mxu0 0.0
  %561 = vmatpush1.msra.mxu0 0.0
  %562 = vmatprep.subr.mxu0 0.0
  %563 = vmatpush1.msra.mxu0 0.0
  %564 = vmatprep.subr.mxu0 0.0
  %565 = vmatpush1.msra.mxu0 0.0
  %566 = vmatprep.subr.mxu0 0.0
  %567 = vmatpush1.msra.mxu0 0.0
  %568 = vmatprep.subr.mxu0 0.0
  %569 = vmatpush1.msra.mxu0 0.0
  %570 = vmatprep.mubr.f32.mxu0 0.0
  %571 = vmatmul.mubr.f32.gmra.mrb[0].mxu0 %v504
  %v572 = vpop.f32.mrb[0].mxu0
  %v573 = vadd.f32 0.0, %v572
  %v574 = vpop.f32.mrb[0].mxu0
  %575 = vdwg.mxu0
  %v576 = vadd.f32 %v26, %v573
  %v577 = vtanh.pop %v576
  %579 = vrot.lane.b32.xlu0 %v502, 8
  %v580 = vpop.permute.xlu0 %579
  %v582 = vsel %vm43, %v577, %v580
  %v584 = vsel %vm120, %v582, 0
  %586 = vmatprep.subr.mxu0 0.0
  %587 = vmatpush1.msra.mxu0 %v32
  %588 = vmatprep.subr.mxu0 0.0
  %589 = vmatpush1.msra.mxu0 %v33
  %590 = vmatprep.subr.mxu0 0.0
  %591 = vmatpush1.msra.mxu0 0.0
  %592 = vmatprep.subr.mxu0 0.0
  %593 = vmatpush1.msra.mxu0 0.0
  %594 = vmatprep.subr.mxu0 0.0
  %595 = vmatpush1.msra.mxu0 0.0
  %596 = vmatprep.subr.mxu0 0.0
  %597 = vmatpush1.msra.mxu0 0.0
  %598 = vmatprep.subr.mxu0 0.0
  %599 = vmatpush1.msra.mxu0 0.0
  %600 = vmatprep.subr.mxu0 0.0
  %601 = vmatpush1.msra.mxu0 0.0
  %602 = vmatprep.subr.mxu0 0.0
  %603 = vmatpush1.msra.mxu0 0.0
  %604 = vmatprep.subr.mxu0 0.0
  %605 = vmatpush1.msra.mxu0 0.0
  %606 = vmatprep.subr.mxu0 0.0
  %607 = vmatpush1.msra.mxu0 0.0
  %608 = vmatprep.subr.mxu0 0.0
  %609 = vmatpush1.msra.mxu0 0.0
  %610 = vmatprep.subr.mxu0 0.0
  %611 = vmatpush1.msra.mxu0 0.0
  %612 = vmatprep.subr.mxu0 0.0
  %613 = vmatpush1.msra.mxu0 0.0
  %614 = vmatprep.subr.mxu0 0.0
  %615 = vmatpush1.msra.mxu0 0.0
  %616 = vmatprep.subr.mxu0 0.0
  %617 = vmatpush1.msra.mxu0 0.0
  %618 = vmatprep.subr.mxu0 0.0
  %619 = vmatpush1.msra.mxu0 0.0
  %620 = vmatprep.subr.mxu0 0.0
  %621 = vmatpush1.msra.mxu0 0.0
  %622 = vmatprep.subr.mxu0 0.0
  %623 = vmatpush1.msra.mxu0 0.0
  %624 = vmatprep.subr.mxu0 0.0
  %625 = vmatpush1.msra.mxu0 0.0
  %626 = vmatprep.subr.mxu0 0.0
  %627 = vmatpush1.msra.mxu0 0.0
  %628 = vmatprep.subr.mxu0 0.0
  %629 = vmatpush1.msra.mxu0 0.0
  %630 = vmatprep.subr.mxu0 0.0
  %631 = vmatpush1.msra.mxu0 0.0
  %632 = vmatprep.subr.mxu0 0.0
  %633 = vmatpush1.msra.mxu0 0.0
  %634 = vmatprep.subr.mxu0 0.0
  %635 = vmatpush1.msra.mxu0 0.0
  %636 = vmatprep.subr.mxu0 0.0
  %637 = vmatpush1.msra.mxu0 0.0
  %638 = vmatprep.subr.mxu0 0.0
  %639 = vmatpush1.msra.mxu0 0.0
  %640 = vmatprep.subr.mxu0 0.0
  %641 = vmatpush1.msra.mxu0 0.0
  %642 = vmatprep.subr.mxu0 0.0
  %643 = vmatpush1.msra.mxu0 0.0
  %644 = vmatprep.subr.mxu0 0.0
  %645 = vmatpush1.msra.mxu0 0.0
  %646 = vmatprep.subr.mxu0 0.0
  %647 = vmatpush1.msra.mxu0 0.0
  %648 = vmatprep.subr.mxu0 0.0
  %649 = vmatpush1.msra.mxu0 0.0
  %650 = vmatprep.mubr.f32.mxu0 0.0
  %651 = vmatmul.mubr.f32.gmra.mrb[0].mxu0 %v584
  %v652 = vpop.f32.mrb[0].mxu0
  %v653 = vadd.f32 %v39, %v652
  %v654 = vpop.f32.mrb[0].mxu0
  %655 = vdwg.mxu0
  %v656 = vtanh.pop %v653
  %v658 = vsel %vm43, %v577, 0
  %660 = vmatprep.subr.mxu0 0.0
  %661 = vmatpush1.msra.mxu0 %v31
  %662 = vmatprep.subr.mxu0 0.0
  %663 = vmatpush1.msra.mxu0 0.0
  %664 = vmatprep.subr.mxu0 0.0
  %665 = vmatpush1.msra.mxu0 0.0
  %666 = vmatprep.subr.mxu0 0.0
  %667 = vmatpush1.msra.mxu0 0.0
  %668 = vmatprep.subr.mxu0 0.0
  %669 = vmatpush1.msra.mxu0 0.0
  %670 = vmatprep.subr.mxu0 0.0
  %671 = vmatpush1.msra.mxu0 0.0
  %672 = vmatprep.subr.mxu0 0.0
  %673 = vmatpush1.msra.mxu0 0.0
  %674 = vmatprep.subr.mxu0 0.0
  %675 = vmatpush1.msra.mxu0 0.0
  %676 = vmatprep.subr.mxu0 0.0
  %677 = vmatpush1.msra.mxu0 0.0
  %678 = vmatprep.subr.mxu0 0.0
  %679 = vmatpush1.msra.mxu0 0.0
  %680 = vmatprep.subr.mxu0 0.0
  %681 = vmatpush1.msra.mxu0 0.0
  %682 = vmatprep.subr.mxu0 0.0
  %683 = vmatpush1.msra.mxu0 0.0
  %684 = vmatprep.subr.mxu0 0.0
  %685 = vmatpush1.msra.mxu0 0.0
  %686 = vmatprep.subr.mxu0 0.0
  %687 = vmatpush1.msra.mxu0 0.0
  %688 = vmatprep.subr.mxu0 0.0
  %689 = vmatpush1.msra.mxu0 0.0
  %690 = vmatprep.subr.mxu0 0.0
  %691 = vmatpush1.msra.mxu0 0.0
  %692 = vmatprep.subr.mxu0 0.0
  %693 = vmatpush1.msra.mxu0 0.0
  %694 = vmatprep.subr.mxu0 0.0
  %695 = vmatpush1.msra.mxu0 0.0
  %696 = vmatprep.subr.mxu0 0.0
  %697 = vmatpush1.msra.mxu0 0.0
  %698 = vmatprep.subr.mxu0 0.0
  %699 = vmatpush1.msra.mxu0 0.0
  %700 = vmatprep.subr.mxu0 0.0
  %701 = vmatpush1.msra.mxu0 0.0
  %702 = vmatprep.subr.mxu0 0.0
  %703 = vmatpush1.msra.mxu0 0.0
  %704 = vmatprep.subr.mxu0 0.0
  %705 = vmatpush1.msra.mxu0 0.0
  %706 = vmatprep.subr.mxu0 0.0
  %707 = vmatpush1.msra.mxu0 0.0
  %708 = vmatprep.subr.mxu0 0.0
  %709 = vmatpush1.msra.mxu0 0.0
  %710 = vmatprep.subr.mxu0 0.0
  %711 = vmatpush1.msra.mxu0 0.0
  %712 = vmatprep.subr.mxu0 0.0
  %713 = vmatpush1.msra.mxu0 0.0
  %714 = vmatprep.subr.mxu0 0.0
  %715 = vmatpush1.msra.mxu0 0.0
  %716 = vmatprep.subr.mxu0 0.0
  %717 = vmatpush1.msra.mxu0 0.0
  %718 = vmatprep.subr.mxu0 0.0
  %719 = vmatpush1.msra.mxu0 0.0
  %720 = vmatprep.subr.mxu0 0.0
  %721 = vmatpush1.msra.mxu0 0.0
  %722 = vmatprep.subr.mxu0 0.0
  %723 = vmatpush1.msra.mxu0 0.0
  %724 = vmatprep.mubr.f32.mxu0 0.0
  %725 = vmatmul.mubr.f32.gmra.mrb[0].mxu0 %v658
  %v726 = vpop.f32.mrb[0].mxu0
  %v727 = vadd.f32 0.0, %v726
  %v728 = vpop.f32.mrb[0].mxu0
  %729 = vdwg.mxu0
  %v730 = vadd.f32 %v27, %v727
  %v731 = vtanh.pop %v730
  %733 = vrot.lane.b32.xlu0 %v656, 8
  %v734 = vpop.permute.xlu0 %733
  %v736 = vsel %vm43, %v731, %v734
  %v738 = vsel %vm120, %v736, 0
  %740 = vmatprep.subr.mxu0 0.0
  %741 = vmatpush1.msra.mxu0 %v32
  %742 = vmatprep.subr.mxu0 0.0
  %743 = vmatpush1.msra.mxu0 %v33
  %744 = vmatprep.subr.mxu0 0.0
  %745 = vmatpush1.msra.mxu0 0.0
  %746 = vmatprep.subr.mxu0 0.0
  %747 = vmatpush1.msra.mxu0 0.0
  %748 = vmatprep.subr.mxu0 0.0
  %749 = vmatpush1.msra.mxu0 0.0
  %750 = vmatprep.subr.mxu0 0.0
  %751 = vmatpush1.msra.mxu0 0.0
  %752 = vmatprep.subr.mxu0 0.0
  %753 = vmatpush1.msra.mxu0 0.0
  %754 = vmatprep.subr.mxu0 0.0
  %755 = vmatpush1.msra.mxu0 0.0
  %756 = vmatprep.subr.mxu0 0.0
  %757 = vmatpush1.msra.mxu0 0.0
  %758 = vmatprep.subr.mxu0 0.0
  %759 = vmatpush1.msra.mxu0 0.0
  %760 = vmatprep.subr.mxu0 0.0
  %761 = vmatpush1.msra.mxu0 0.0
  %762 = vmatprep.subr.mxu0 0.0
  %763 = vmatpush1.msra.mxu0 0.0
  %764 = vmatprep.subr.mxu0 0.0
  %765 = vmatpush1.msra.mxu0 0.0
  %766 = vmatprep.subr.mxu0 0.0
  %767 = vmatpush1.msra.mxu0 0.0
  %768 = vmatprep.subr.mxu0 0.0
  %769 = vmatpush1.msra.mxu0 0.0
  %770 = vmatprep.subr.mxu0 0.0
  %771 = vmatpush1.msra.mxu0 0.0
  %772 = vmatprep.subr.mxu0 0.0
  %773 = vmatpush1.msra.mxu0 0.0
  %774 = vmatprep.subr.mxu0 0.0
  %775 = vmatpush1.msra.mxu0 0.0
  %776 = vmatprep.subr.mxu0 0.0
  %777 = vmatpush1.msra.mxu0 0.0
  %778 = vmatprep.subr.mxu0 0.0
  %779 = vmatpush1.msra.mxu0 0.0
  %780 = vmatprep.subr.mxu0 0.0
  %781 = vmatpush1.msra.mxu0 0.0
  %782 = vmatprep.subr.mxu0 0.0
  %783 = vmatpush1.msra.mxu0 0.0
  %784 = vmatprep.subr.mxu0 0.0
  %785 = vmatpush1.msra.mxu0 0.0
  %786 = vmatprep.subr.mxu0 0.0
  %787 = vmatpush1.msra.mxu0 0.0
  %788 = vmatprep.subr.mxu0 0.0
  %789 = vmatpush1.msra.mxu0 0.0
  %790 = vmatprep.subr.mxu0 0.0
  %791 = vmatpush1.msra.mxu0 0.0
  %792 = vmatprep.subr.mxu0 0.0
  %793 = vmatpush1.msra.mxu0 0.0
  %794 = vmatprep.subr.mxu0 0.0
  %795 = vmatpush1.msra.mxu0 0.0
  %796 = vmatprep.subr.mxu0 0.0
  %797 = vmatpush1.msra.mxu0 0.0
  %798 = vmatprep.subr.mxu0 0.0
  %799 = vmatpush1.msra.mxu0 0.0
  %800 = vmatprep.subr.mxu0 0.0
  %801 = vmatpush1.msra.mxu0 0.0
  %802 = vmatprep.subr.mxu0 0.0
  %803 = vmatpush1.msra.mxu0 0.0
  %804 = vmatprep.mubr.f32.mxu0 0.0
  %805 = vmatmul.mubr.f32.gmra.mrb[0].mxu0 %v738
  %v806 = vpop.f32.mrb[0].mxu0
  %v807 = vadd.f32 %v39, %v806
  %v808 = vpop.f32.mrb[0].mxu0
  %809 = vdwg.mxu0
  %v810 = vtanh.pop %v807
  %v812 = vsel %vm43, %v731, 0
  %814 = vmatprep.subr.mxu0 0.0
  %815 = vmatpush1.msra.mxu0 %v31
  %816 = vmatprep.subr.mxu0 0.0
  %817 = vmatpush1.msra.mxu0 0.0
  %818 = vmatprep.subr.mxu0 0.0
  %819 = vmatpush1.msra.mxu0 0.0
  %820 = vmatprep.subr.mxu0 0.0
  %821 = vmatpush1.msra.mxu0 0.0
  %822 = vmatprep.subr.mxu0 0.0
  %823 = vmatpush1.msra.mxu0 0.0
  %824 = vmatprep.subr.mxu0 0.0
  %825 = vmatpush1.msra.mxu0 0.0
  %826 = vmatprep.subr.mxu0 0.0
  %827 = vmatpush1.msra.mxu0 0.0
  %828 = vmatprep.subr.mxu0 0.0
  %829 = vmatpush1.msra.mxu0 0.0
  %830 = vmatprep.subr.mxu0 0.0
  %831 = vmatpush1.msra.mxu0 0.0
  %832 = vmatprep.subr.mxu0 0.0
  %833 = vmatpush1.msra.mxu0 0.0
  %834 = vmatprep.subr.mxu0 0.0
  %835 = vmatpush1.msra.mxu0 0.0
  %836 = vmatprep.subr.mxu0 0.0
  %837 = vmatpush1.msra.mxu0 0.0
  %838 = vmatprep.subr.mxu0 0.0
  %839 = vmatpush1.msra.mxu0 0.0
  %840 = vmatprep.subr.mxu0 0.0
  %841 = vmatpush1.msra.mxu0 0.0
  %842 = vmatprep.subr.mxu0 0.0
  %843 = vmatpush1.msra.mxu0 0.0
  %844 = vmatprep.subr.mxu0 0.0
  %845 = vmatpush1.msra.mxu0 0.0
  %846 = vmatprep.subr.mxu0 0.0
  %847 = vmatpush1.msra.mxu0 0.0
  %848 = vmatprep.subr.mxu0 0.0
  %849 = vmatpush1.msra.mxu0 0.0
  %850 = vmatprep.subr.mxu0 0.0
  %851 = vmatpush1.msra.mxu0 0.0
  %852 = vmatprep.subr.mxu0 0.0
  %853 = vmatpush1.msra.mxu0 0.0
  %854 = vmatprep.subr.mxu0 0.0
  %855 = vmatpush1.msra.mxu0 0.0
  %856 = vmatprep.subr.mxu0 0.0
  %857 = vmatpush1.msra.mxu0 0.0
  %858 = vmatprep.subr.mxu0 0.0
  %859 = vmatpush1.msra.mxu0 0.0
  %860 = vmatprep.subr.mxu0 0.0
  %861 = vmatpush1.msra.mxu0 0.0
  %862 = vmatprep.subr.mxu0 0.0
  %863 = vmatpush1.msra.mxu0 0.0
  %864 = vmatprep.subr.mxu0 0.0
  %865 = vmatpush1.msra.mxu0 0.0
  %866 = vmatprep.subr.mxu0 0.0
  %867 = vmatpush1.msra.mxu0 0.0
  %868 = vmatprep.subr.mxu0 0.0
  %869 = vmatpush1.msra.mxu0 0.0
  %870 = vmatprep.subr.mxu0 0.0
  %871 = vmatpush1.msra.mxu0 0.0
  %872 = vmatprep.subr.mxu0 0.0
  %873 = vmatpush1.msra.mxu0 0.0
  %874 = vmatprep.subr.mxu0 0.0
  %875 = vmatpush1.msra.mxu0 0.0
  %876 = vmatprep.subr.mxu0 0.0
  %877 = vmatpush1.msra.mxu0 0.0
  %878 = vmatprep.mubr.f32.mxu0 0.0
  %879 = vmatmul.mubr.f32.gmra.mrb[0].mxu0 %v812
  %v880 = vpop.f32.mrb[0].mxu0
  %v881 = vadd.f32 0.0, %v880
  %v882 = vpop.f32.mrb[0].mxu0
  %883 = vdwg.mxu0
  %v884 = vadd.f32 %v28, %v881
  %v885 = vtanh.pop %v884
  %887 = vrot.lane.b32.xlu0 %v810, 8
  %v888 = vpop.permute.xlu0 %887
  %v890 = vsel %vm43, %v885, %v888
  %v892 = vsel %vm120, %v890, 0
  %894 = vmatprep.subr.mxu0 0.0
  %895 = vmatpush1.msra.mxu0 %v32
  %896 = vmatprep.subr.mxu0 0.0
  %897 = vmatpush1.msra.mxu0 %v33
  %898 = vmatprep.subr.mxu0 0.0
  %899 = vmatpush1.msra.mxu0 0.0
  %900 = vmatprep.subr.mxu0 0.0
  %901 = vmatpush1.msra.mxu0 0.0
  %902 = vmatprep.subr.mxu0 0.0
  %903 = vmatpush1.msra.mxu0 0.0
  %904 = vmatprep.subr.mxu0 0.0
  %905 = vmatpush1.msra.mxu0 0.0
  %906 = vmatprep.subr.mxu0 0.0
  %907 = vmatpush1.msra.mxu0 0.0
  %908 = vmatprep.subr.mxu0 0.0
  %909 = vmatpush1.msra.mxu0 0.0
  %910 = vmatprep.subr.mxu0 0.0
  %911 = vmatpush1.msra.mxu0 0.0
  %912 = vmatprep.subr.mxu0 0.0
  %913 = vmatpush1.msra.mxu0 0.0
  %914 = vmatprep.subr.mxu0 0.0
  %915 = vmatpush1.msra.mxu0 0.0
  %916 = vmatprep.subr.mxu0 0.0
  %917 = vmatpush1.msra.mxu0 0.0
  %918 = vmatprep.subr.mxu0 0.0
  %919 = vmatpush1.msra.mxu0 0.0
  %920 = vmatprep.subr.mxu0 0.0
  %921 = vmatpush1.msra.mxu0 0.0
  %922 = vmatprep.subr.mxu0 0.0
  %923 = vmatpush1.msra.mxu0 0.0
  %924 = vmatprep.subr.mxu0 0.0
  %925 = vmatpush1.msra.mxu0 0.0
  %926 = vmatprep.subr.mxu0 0.0
  %927 = vmatpush1.msra.mxu0 0.0
  %928 = vmatprep.subr.mxu0 0.0
  %929 = vmatpush1.msra.mxu0 0.0
  %930 = vmatprep.subr.mxu0 0.0
  %931 = vmatpush1.msra.mxu0 0.0
  %932 = vmatprep.subr.mxu0 0.0
  %933 = vmatpush1.msra.mxu0 0.0
  %934 = vmatprep.subr.mxu0 0.0
  %935 = vmatpush1.msra.mxu0 0.0
  %936 = vmatprep.subr.mxu0 0.0
  %937 = vmatpush1.msra.mxu0 0.0
  %938 = vmatprep.subr.mxu0 0.0
  %939 = vmatpush1.msra.mxu0 0.0
  %940 = vmatprep.subr.mxu0 0.0
  %941 = vmatpush1.msra.mxu0 0.0
  %942 = vmatprep.subr.mxu0 0.0
  %943 = vmatpush1.msra.mxu0 0.0
  %944 = vmatprep.subr.mxu0 0.0
  %945 = vmatpush1.msra.mxu0 0.0
  %946 = vmatprep.subr.mxu0 0.0
  %947 = vmatpush1.msra.mxu0 0.0
  %948 = vmatprep.subr.mxu0 0.0
  %949 = vmatpush1.msra.mxu0 0.0
  %950 = vmatprep.subr.mxu0 0.0
  %951 = vmatpush1.msra.mxu0 0.0
  %952 = vmatprep.subr.mxu0 0.0
  %953 = vmatpush1.msra.mxu0 0.0
  %954 = vmatprep.subr.mxu0 0.0
  %955 = vmatpush1.msra.mxu0 0.0
  %956 = vmatprep.subr.mxu0 0.0
  %957 = vmatpush1.msra.mxu0 0.0
  %958 = vmatprep.mubr.f32.mxu0 0.0
  %959 = vmatmul.mubr.f32.gmra.mrb[0].mxu0 %v892
  %v960 = vpop.f32.mrb[0].mxu0
  %v961 = vadd.f32 %v39, %v960
  %v962 = vpop.f32.mrb[0].mxu0
  %963 = vdwg.mxu0
  %v964 = vtanh.pop %v961
  %v966 = vsel %vm43, %v885, 0
  %968 = vmatprep.subr.mxu0 0.0
  %969 = vmatpush1.msra.mxu0 %v31
  %970 = vmatprep.subr.mxu0 0.0
  %971 = vmatpush1.msra.mxu0 0.0
  %972 = vmatprep.subr.mxu0 0.0
  %973 = vmatpush1.msra.mxu0 0.0
  %974 = vmatprep.subr.mxu0 0.0
  %975 = vmatpush1.msra.mxu0 0.0
  %976 = vmatprep.subr.mxu0 0.0
  %977 = vmatpush1.msra.mxu0 0.0
  %978 = vmatprep.subr.mxu0 0.0
  %979 = vmatpush1.msra.mxu0 0.0
  %980 = vmatprep.subr.mxu0 0.0
  %981 = vmatpush1.msra.mxu0 0.0
  %982 = vmatprep.subr.mxu0 0.0
  %983 = vmatpush1.msra.mxu0 0.0
  %984 = vmatprep.subr.mxu0 0.0
  %985 = vmatpush1.msra.mxu0 0.0
  %986 = vmatprep.subr.mxu0 0.0
  %987 = vmatpush1.msra.mxu0 0.0
  %988 = vmatprep.subr.mxu0 0.0
  %989 = vmatpush1.msra.mxu0 0.0
  %990 = vmatprep.subr.mxu0 0.0
  %991 = vmatpush1.msra.mxu0 0.0
  %992 = vmatprep.subr.mxu0 0.0
  %993 = vmatpush1.msra.mxu0 0.0
  %994 = vmatprep.subr.mxu0 0.0
  %995 = vmatpush1.msra.mxu0 0.0
  %996 = vmatprep.subr.mxu0 0.0
  %997 = vmatpush1.msra.mxu0 0.0
  %998 = vmatprep.subr.mxu0 0.0
  %999 = vmatpush1.msra.mxu0 0.0
  %1000 = vmatprep.subr.mxu0 0.0
  %1001 = vmatpush1.msra.mxu0 0.0
  %1002 = vmatprep.subr.mxu0 0.0
  %1003 = vmatpush1.msra.mxu0 0.0
  %1004 = vmatprep.subr.mxu0 0.0
  %1005 = vmatpush1.msra.mxu0 0.0
  %1006 = vmatprep.subr.mxu0 0.0
  %1007 = vmatpush1.msra.mxu0 0.0
  %1008 = vmatprep.subr.mxu0 0.0
  %1009 = vmatpush1.msra.mxu0 0.0
  %1010 = vmatprep.subr.mxu0 0.0
  %1011 = vmatpush1.msra.mxu0 0.0
  %1012 = vmatprep.subr.mxu0 0.0
  %1013 = vmatpush1.msra.mxu0 0.0
  %1014 = vmatprep.subr.mxu0 0.0
  %1015 = vmatpush1.msra.mxu0 0.0
  %1016 = vmatprep.subr.mxu0 0.0
  %1017 = vmatpush1.msra.mxu0 0.0
  %1018 = vmatprep.subr.mxu0 0.0
  %1019 = vmatpush1.msra.mxu0 0.0
  %1020 = vmatprep.subr.mxu0 0.0
  %1021 = vmatpush1.msra.mxu0 0.0
  %1022 = vmatprep.subr.mxu0 0.0
  %1023 = vmatpush1.msra.mxu0 0.0
  %1024 = vmatprep.subr.mxu0 0.0
  %1025 = vmatpush1.msra.mxu0 0.0
  %1026 = vmatprep.subr.mxu0 0.0
  %1027 = vmatpush1.msra.mxu0 0.0
  %1028 = vmatprep.subr.mxu0 0.0
  %1029 = vmatpush1.msra.mxu0 0.0
  %1030 = vmatprep.subr.mxu0 0.0
  %1031 = vmatpush1.msra.mxu0 0.0
  %1032 = vmatprep.mubr.f32.mxu0 0.0
  %1033 = vmatmul.mubr.f32.gmra.mrb[0].mxu0 %v966
  %v1034 = vpop.f32.mrb[0].mxu0
  %v1035 = vadd.f32 0.0, %v1034
  %v1036 = vpop.f32.mrb[0].mxu0
  %1037 = vdwg.mxu0
  %v1038 = vadd.f32 %v29, %v1035
  %v1039 = vtanh.pop %v1038
  %1041 = vrot.lane.b32.xlu0 %v964, 8
  %v1042 = vpop.permute.xlu0 %1041
  %v1044 = vsel %vm43, %v1039, %v1042
  %v1046 = vsel %vm120, %v1044, 0
  %1048 = vmatprep.subr.mxu0 0.0
  %1049 = vmatpush1.msra.mxu0 %v32
  %1050 = vmatprep.subr.mxu0 0.0
  %1051 = vmatpush1.msra.mxu0 %v33
  %1052 = vmatprep.subr.mxu0 0.0
  %1053 = vmatpush1.msra.mxu0 0.0
  %1054 = vmatprep.subr.mxu0 0.0
  %1055 = vmatpush1.msra.mxu0 0.0
  %1056 = vmatprep.subr.mxu0 0.0
  %1057 = vmatpush1.msra.mxu0 0.0
  %1058 = vmatprep.subr.mxu0 0.0
  %1059 = vmatpush1.msra.mxu0 0.0
  %1060 = vmatprep.subr.mxu0 0.0
  %1061 = vmatpush1.msra.mxu0 0.0
  %1062 = vmatprep.subr.mxu0 0.0
  %1063 = vmatpush1.msra.mxu0 0.0
  %1064 = vmatprep.subr.mxu0 0.0
  %1065 = vmatpush1.msra.mxu0 0.0
  %1066 = vmatprep.subr.mxu0 0.0
  %1067 = vmatpush1.msra.mxu0 0.0
  %1068 = vmatprep.subr.mxu0 0.0
  %1069 = vmatpush1.msra.mxu0 0.0
  %1070 = vmatprep.subr.mxu0 0.0
  %1071 = vmatpush1.msra.mxu0 0.0
  %1072 = vmatprep.subr.mxu0 0.0
  %1073 = vmatpush1.msra.mxu0 0.0
  %1074 = vmatprep.subr.mxu0 0.0
  %1075 = vmatpush1.msra.mxu0 0.0
  %1076 = vmatprep.subr.mxu0 0.0
  %1077 = vmatpush1.msra.mxu0 0.0
  %1078 = vmatprep.subr.mxu0 0.0
  %1079 = vmatpush1.msra.mxu0 0.0
  %1080 = vmatprep.subr.mxu0 0.0
  %1081 = vmatpush1.msra.mxu0 0.0
  %1082 = vmatprep.subr.mxu0 0.0
  %1083 = vmatpush1.msra.mxu0 0.0
  %1084 = vmatprep.subr.mxu0 0.0
  %1085 = vmatpush1.msra.mxu0 0.0
  %1086 = vmatprep.subr.mxu0 0.0
  %1087 = vmatpush1.msra.mxu0 0.0
  %1088 = vmatprep.subr.mxu0 0.0
  %1089 = vmatpush1.msra.mxu0 0.0
  %1090 = vmatprep.subr.mxu0 0.0
  %1091 = vmatpush1.msra.mxu0 0.0
  %1092 = vmatprep.subr.mxu0 0.0
  %1093 = vmatpush1.msra.mxu0 0.0
  %1094 = vmatprep.subr.mxu0 0.0
  %1095 = vmatpush1.msra.mxu0 0.0
  %1096 = vmatprep.subr.mxu0 0.0
  %1097 = vmatpush1.msra.mxu0 0.0
  %1098 = vmatprep.subr.mxu0 0.0
  %1099 = vmatpush1.msra.mxu0 0.0
  %1100 = vmatprep.subr.mxu0 0.0
  %1101 = vmatpush1.msra.mxu0 0.0
  %1102 = vmatprep.subr.mxu0 0.0
  %1103 = vmatpush1.msra.mxu0 0.0
  %1104 = vmatprep.subr.mxu0 0.0
  %1105 = vmatpush1.msra.mxu0 0.0
  %1106 = vmatprep.subr.mxu0 0.0
  %1107 = vmatpush1.msra.mxu0 0.0
  %1108 = vmatprep.subr.mxu0 0.0
  %1109 = vmatpush1.msra.mxu0 0.0
  %1110 = vmatprep.subr.mxu0 0.0
  %1111 = vmatpush1.msra.mxu0 0.0
  %1112 = vmatprep.mubr.f32.mxu0 0.0
  %1113 = vmatmul.mubr.f32.gmra.mrb[0].mxu0 %v1046
  %v1114 = vpop.f32.mrb[0].mxu0
  %v1115 = vadd.f32 %v39, %v1114
  %v1116 = vpop.f32.mrb[0].mxu0
  %1117 = vdwg.mxu0
  %v1118 = vtanh.pop %v1115
  %v1120 = vsel %vm43, %v1039, 0
  %1122 = vmatprep.subr.mxu0 0.0
  %1123 = vmatpush1.msra.mxu0 %v31
  %1124 = vmatprep.subr.mxu0 0.0
  %1125 = vmatpush1.msra.mxu0 0.0
  %1126 = vmatprep.subr.mxu0 0.0
  %1127 = vmatpush1.msra.mxu0 0.0
  %1128 = vmatprep.subr.mxu0 0.0
  %1129 = vmatpush1.msra.mxu0 0.0
  %1130 = vmatprep.subr.mxu0 0.0
  %1131 = vmatpush1.msra.mxu0 0.0
  %1132 = vmatprep.subr.mxu0 0.0
  %1133 = vmatpush1.msra.mxu0 0.0
  %1134 = vmatprep.subr.mxu0 0.0
  %1135 = vmatpush1.msra.mxu0 0.0
  %1136 = vmatprep.subr.mxu0 0.0
  %1137 = vmatpush1.msra.mxu0 0.0
  %1138 = vmatprep.subr.mxu0 0.0
  %1139 = vmatpush1.msra.mxu0 0.0
  %1140 = vmatprep.subr.mxu0 0.0
  %1141 = vmatpush1.msra.mxu0 0.0
  %1142 = vmatprep.subr.mxu0 0.0
  %1143 = vmatpush1.msra.mxu0 0.0
  %1144 = vmatprep.subr.mxu0 0.0
  %1145 = vmatpush1.msra.mxu0 0.0
  %1146 = vmatprep.subr.mxu0 0.0
  %1147 = vmatpush1.msra.mxu0 0.0
  %1148 = vmatprep.subr.mxu0 0.0
  %1149 = vmatpush1.msra.mxu0 0.0
  %1150 = vmatprep.subr.mxu0 0.0
  %1151 = vmatpush1.msra.mxu0 0.0
  %1152 = vmatprep.subr.mxu0 0.0
  %1153 = vmatpush1.msra.mxu0 0.0
  %1154 = vmatprep.subr.mxu0 0.0
  %1155 = vmatpush1.msra.mxu0 0.0
  %1156 = vmatprep.subr.mxu0 0.0
  %1157 = vmatpush1.msra.mxu0 0.0
  %1158 = vmatprep.subr.mxu0 0.0
  %1159 = vmatpush1.msra.mxu0 0.0
  %1160 = vmatprep.subr.mxu0 0.0
  %1161 = vmatpush1.msra.mxu0 0.0
  %1162 = vmatprep.subr.mxu0 0.0
  %1163 = vmatpush1.msra.mxu0 0.0
  %1164 = vmatprep.subr.mxu0 0.0
  %1165 = vmatpush1.msra.mxu0 0.0
  %1166 = vmatprep.subr.mxu0 0.0
  %1167 = vmatpush1.msra.mxu0 0.0
  %1168 = vmatprep.subr.mxu0 0.0
  %1169 = vmatpush1.msra.mxu0 0.0
  %1170 = vmatprep.subr.mxu0 0.0
  %1171 = vmatpush1.msra.mxu0 0.0
  %1172 = vmatprep.subr.mxu0 0.0
  %1173 = vmatpush1.msra.mxu0 0.0
  %1174 = vmatprep.subr.mxu0 0.0
  %1175 = vmatpush1.msra.mxu0 0.0
  %1176 = vmatprep.subr.mxu0 0.0
  %1177 = vmatpush1.msra.mxu0 0.0
  %1178 = vmatprep.subr.mxu0 0.0
  %1179 = vmatpush1.msra.mxu0 0.0
  %1180 = vmatprep.subr.mxu0 0.0
  %1181 = vmatpush1.msra.mxu0 0.0
  %1182 = vmatprep.subr.mxu0 0.0
  %1183 = vmatpush1.msra.mxu0 0.0
  %1184 = vmatprep.subr.mxu0 0.0
  %1185 = vmatpush1.msra.mxu0 0.0
  %1186 = vmatprep.mubr.f32.mxu0 0.0
  %1187 = vmatmul.mubr.f32.gmra.mrb[0].mxu0 %v1120
  %v1188 = vpop.f32.mrb[0].mxu0
  %v1189 = vadd.f32 0.0, %v1188
  %v1190 = vpop.f32.mrb[0].mxu0
  %1191 = vdwg.mxu0
  %v1192 = vadd.f32 %v30, %v1189
  %v1193 = vtanh.pop %v1192
  %1195 = vrot.lane.b32.xlu0 %v1118, 8
  %v1196 = vpop.permute.xlu0 %1195
  %v1198 = vsel %vm43, %v1193, %v1196
  %v1200 = vsel %vm120, %v1198, 0
  %1202 = vmatprep.subr.mxu0 0.0
  %1203 = vmatpush1.msra.mxu0 %v32
  %1204 = vmatprep.subr.mxu0 0.0
  %1205 = vmatpush1.msra.mxu0 %v33
  %1206 = vmatprep.subr.mxu0 0.0
  %1207 = vmatpush1.msra.mxu0 0.0
  %1208 = vmatprep.subr.mxu0 0.0
  %1209 = vmatpush1.msra.mxu0 0.0
  %1210 = vmatprep.subr.mxu0 0.0
  %1211 = vmatpush1.msra.mxu0 0.0
  %1212 = vmatprep.subr.mxu0 0.0
  %1213 = vmatpush1.msra.mxu0 0.0
  %1214 = vmatprep.subr.mxu0 0.0
  %1215 = vmatpush1.msra.mxu0 0.0
  %1216 = vmatprep.subr.mxu0 0.0
  %1217 = vmatpush1.msra.mxu0 0.0
  %1218 = vmatprep.subr.mxu0 0.0
  %1219 = vmatpush1.msra.mxu0 0.0
  %1220 = vmatprep.subr.mxu0 0.0
  %1221 = vmatpush1.msra.mxu0 0.0
  %1222 = vmatprep.subr.mxu0 0.0
  %1223 = vmatpush1.msra.mxu0 0.0
  %1224 = vmatprep.subr.mxu0 0.0
  %1225 = vmatpush1.msra.mxu0 0.0
  %1226 = vmatprep.subr.mxu0 0.0
  %1227 = vmatpush1.msra.mxu0 0.0
  %1228 = vmatprep.subr.mxu0 0.0
  %1229 = vmatpush1.msra.mxu0 0.0
  %1230 = vmatprep.subr.mxu0 0.0
  %1231 = vmatpush1.msra.mxu0 0.0
  %1232 = vmatprep.subr.mxu0 0.0
  %1233 = vmatpush1.msra.mxu0 0.0
  %1234 = vmatprep.subr.mxu0 0.0
  %1235 = vmatpush1.msra.mxu0 0.0
  %1236 = vmatprep.subr.mxu0 0.0
  %1237 = vmatpush1.msra.mxu0 0.0
  %1238 = vmatprep.subr.mxu0 0.0
  %1239 = vmatpush1.msra.mxu0 0.0
  %1240 = vmatprep.subr.mxu0 0.0
  %1241 = vmatpush1.msra.mxu0 0.0
  %1242 = vmatprep.subr.mxu0 0.0
  %1243 = vmatpush1.msra.mxu0 0.0
  %1244 = vmatprep.subr.mxu0 0.0
  %1245 = vmatpush1.msra.mxu0 0.0
  %1246 = vmatprep.subr.mxu0 0.0
  %1247 = vmatpush1.msra.mxu0 0.0
  %1248 = vmatprep.subr.mxu0 0.0
  %1249 = vmatpush1.msra.mxu0 0.0
  %1250 = vmatprep.subr.mxu0 0.0
  %1251 = vmatpush1.msra.mxu0 0.0
  %1252 = vmatprep.subr.mxu0 0.0
  %1253 = vmatpush1.msra.mxu0 0.0
  %1254 = vmatprep.subr.mxu0 0.0
  %1255 = vmatpush1.msra.mxu0 0.0
  %1256 = vmatprep.subr.mxu0 0.0
  %1257 = vmatpush1.msra.mxu0 0.0
  %1258 = vmatprep.subr.mxu0 0.0
  %1259 = vmatpush1.msra.mxu0 0.0
  %1260 = vmatprep.subr.mxu0 0.0
  %1261 = vmatpush1.msra.mxu0 0.0
  %1262 = vmatprep.subr.mxu0 0.0
  %1263 = vmatpush1.msra.mxu0 0.0
  %1264 = vmatprep.subr.mxu0 0.0
  %1265 = vmatpush1.msra.mxu0 0.0
  %1266 = vmatprep.mubr.f32.mxu0 0.0
  %1267 = vmatmul.mubr.f32.gmra.mrb[0].mxu0 %v1200
  %v1268 = vpop.f32.mrb[0].mxu0
  %v1269 = vadd.f32 %v39, %v1268
  %v1270 = vpop.f32.mrb[0].mxu0
  %1271 = vdwg.mxu0
  %v1272 = vtanh.pop %v1269
  %v1273 = vrot.slane %v348, 6
  %v1275 = vrot.slane %v502, 4
  %v1277 = vrot.slane %v656, 2
  %v1279 = vrot.slane %v964, 6
  %v1281 = vrot.slane %v1118, 4
  %v1284 = vrot.slane %v1272, 2
  %vm1286 = vcmask 1041408
  %v1287 = vsel %vm1286, %v194, %v1273
  %vm1288 = vcmask 1043456
  %v1289 = vsel %vm1288, %v1287, %v1275
  %vm1290 = vcmask 1045504
  %v1291 = vsel %vm1290, %v1289, %v1277
  %v1292 = vsel %vm1286, %v810, %v1279
  %v1293 = vsel %vm1288, %v1292, %v1281
  %v1294 = vsel %vm1290, %v1293, %v1284
  %v1296 = vlaneseq
  %v1297 = vshrl.u32 %v1296, 7
  %v1298 = vsub.s32 0, %v1297
  %v1299 = vrot.slane %v42, %v1298
  %v1302 = vsel %vm43, %v1291, 0
  %v1305 = vsel %vm43, %v1294, 0
  %1307 = vmatprep.subr.mxu0 0.0
  %1308 = vmatpush1.msra.mxu0 %v41
  %1309 = vmatprep.subr.mxu0 0.0
  %1310 = vmatpush1.msra.mxu0 0.0
  %1311 = vmatprep.subr.mxu0 0.0
  %1312 = vmatpush1.msra.mxu0 0.0
  %1313 = vmatprep.subr.mxu0 0.0
  %1314 = vmatpush1.msra.mxu0 0.0
  %1315 = vmatprep.subr.mxu0 0.0
  %1316 = vmatpush1.msra.mxu0 0.0
  %1317 = vmatprep.subr.mxu0 0.0
  %1318 = vmatpush1.msra.mxu0 0.0
  %1319 = vmatprep.subr.mxu0 0.0
  %1320 = vmatpush1.msra.mxu0 0.0
  %1321 = vmatprep.subr.mxu0 0.0
  %1322 = vmatpush1.msra.mxu0 0.0
  %1323 = vmatprep.subr.mxu0 0.0
  %1324 = vmatpush1.msra.mxu0 0.0
  %1325 = vmatprep.subr.mxu0 0.0
  %1326 = vmatpush1.msra.mxu0 0.0
  %1327 = vmatprep.subr.mxu0 0.0
  %1328 = vmatpush1.msra.mxu0 0.0
  %1329 = vmatprep.subr.mxu0 0.0
  %1330 = vmatpush1.msra.mxu0 0.0
  %1331 = vmatprep.subr.mxu0 0.0
  %1332 = vmatpush1.msra.mxu0 0.0
  %1333 = vmatprep.subr.mxu0 0.0
  %1334 = vmatpush1.msra.mxu0 0.0
  %1335 = vmatprep.subr.mxu0 0.0
  %1336 = vmatpush1.msra.mxu0 0.0
  %1337 = vmatprep.subr.mxu0 0.0
  %1338 = vmatpush1.msra.mxu0 0.0
  %1339 = vmatprep.subr.mxu0 0.0
  %1340 = vmatpush1.msra.mxu0 0.0
  %1341 = vmatprep.subr.mxu0 0.0
  %1342 = vmatpush1.msra.mxu0 0.0
  %1343 = vmatprep.subr.mxu0 0.0
  %1344 = vmatpush1.msra.mxu0 0.0
  %1345 = vmatprep.subr.mxu0 0.0
  %1346 = vmatpush1.msra.mxu0 0.0
  %1347 = vmatprep.subr.mxu0 0.0
  %1348 = vmatpush1.msra.mxu0 0.0
  %1349 = vmatprep.subr.mxu0 0.0
  %1350 = vmatpush1.msra.mxu0 0.0
  %1351 = vmatprep.subr.mxu0 0.0
  %1352 = vmatpush1.msra.mxu0 0.0
  %1353 = vmatprep.subr.mxu0 0.0
  %1354 = vmatpush1.msra.mxu0 0.0
  %1355 = vmatprep.subr.mxu0 0.0
  %1356 = vmatpush1.msra.mxu0 0.0
  %1357 = vmatprep.subr.mxu0 0.0
  %1358 = vmatpush1.msra.mxu0 0.0
  %1359 = vmatprep.subr.mxu0 0.0
  %1360 = vmatpush1.msra.mxu0 0.0
  %1361 = vmatprep.subr.mxu0 0.0
  %1362 = vmatpush1.msra.mxu0 0.0
  %1363 = vmatprep.subr.mxu0 0.0
  %1364 = vmatpush1.msra.mxu0 0.0
  %1365 = vmatprep.subr.mxu0 0.0
  %1366 = vmatpush1.msra.mxu0 0.0
  %1367 = vmatprep.subr.mxu0 0.0
  %1368 = vmatpush1.msra.mxu0 0.0
  %1369 = vmatprep.subr.mxu0 0.0
  %1370 = vmatpush1.msra.mxu0 0.0
  %1371 = vmatprep.mubr.f32.mxu0 0.0
  %1372 = vmatmul.mubr.f32.gmra.mrb[0].mxu0 %v1302
  %v1373 = vpop.f32.mrb[0].mxu0
  %v1374 = vadd.f32 %v1299, %v1373
  %v1375 = vpop.f32.mrb[0].mxu0
  %1376 = vmatprep.mubr.f32.mxu0 0.0
  %1377 = vmatmul.mubr.f32.gmra.mrb[0].mxu0 %v1305
  %v1378 = vpop.f32.mrb[0].mxu0
  %v1379 = vadd.f32 %v1299, %v1378
  %v1380 = vpop.f32.mrb[0].mxu0
  %1381 = vdwg.mxu0
  %vm1382 = vcmask 31744
  %1383 = vst.msk [vmem:[%s6] sm:$0xff] %vm1382, %v1374
  %1384 = vst.msk [vmem:[%s6 + $0x8] sm:$0xff] %vm1382, %v1379
  // Predicated region
  $region26: #{tpu_custom_call.1} parent=0 // pred_check
    _
  $region27: #{tpu_custom_call.1} parent=0 // pred_check_branch
    %1386 = sbr.rel (0) target = $region29
  $region28: #{tpu_custom_call.1} parent=0 // pred_region
    _
  $region29: #{tpu_custom_call.1} parent=0 // pred_fallthru
    _
  // Predicated region
  $region30: #{tpu_custom_call.1} parent=0 // pred_check
    _
  $region31: #{tpu_custom_call.1} parent=0 // pred_check_branch
    %1388 = sbr.rel (0) target = $region33
  $region32: #{tpu_custom_call.1} parent=0 // pred_region
    _
  $region33: #{tpu_custom_call.1} parent=0 // pred_fallthru
    _

</llo_original>
